<compile_context>
chip_gen: v7x
topology: tpu7x:2x2x1
jax: 0.10.0
libtpu: 0.0.40
codegen_flags: <defaults>
</compile_context>

<pallas_src>
import functools

import jax
import jax.numpy as jnp
import numpy as np
from jax.experimental import pallas as pl
from jax.experimental.pallas import tpu as pltpu

O_PAD = 128  # padded fc_out lane width (real output_dim sliced off in wrapper)


# ----------------------------------------------------------------------------
# Fused Pallas kernel: wavefront LSTM stack + fc_out, whole sequence, no grid.
# ----------------------------------------------------------------------------
def _decoder_kernel(n_layers, T, H,
                    x2d_ref, h0_ref, c0_ref,
                    wih0_ref, bfull_ref, wpack_ref,
                    fcw_ref, fcb_ref,
                    pred_ref, hT_ref, cT_ref):
    """Shapes (all f32):
      x2d_ref   : (T*B, D)          time-major input slab
      h0_ref    : (L, B, H)         initial hidden
      c0_ref    : (L, B, H)         initial cell
      wih0_ref  : (D, L*4H)         layer-0 input proj (other blocks zero)
      bfull_ref : (1, L*4H)         all layers' b_ih + b_hh
      wpack_ref : (L*H, L*4H)       block: diag = Whh_l, super-diag = Wih_l
      fcw_ref   : (H, O_PAD)        fc_out weight, lane-padded
      fcb_ref   : (1, O_PAD)        fc_out bias, lane-padded
      pred_ref  : (T*B, O_PAD)      time-major padded prediction
      hT_ref    : (L, B, H)
      cT_ref    : (L, B, H)
    g-gate columns of wih0/bfull/wpack are pre-scaled by 2 (tanh trick)."""
    B = h0_ref.shape[1]
    G = 4 * H
    LG = n_layers * G

    # Hoisted layer-0 input projection for ALL timesteps (off the serial
    # chain): one (T*B, D) @ (D, L*4H) MXU pass; biases of every layer folded
    # in so the per-step add is a single vector add.
    gx = jnp.dot(x2d_ref[...], wih0_ref[...],
                 preferred_element_type=jnp.float32)                # (T*B, L*4H)
    gx = gx + jnp.broadcast_to(bfull_ref[...], (T * B, LG))

    wpack = wpack_ref[...]                                          # (L*H, L*4H)
    b_trail = jnp.broadcast_to(bfull_ref[...], (B, LG))             # hoisted bcast

    h_state = [h0_ref[l] for l in range(n_layers)]                  # each (B, H)
    c_state = [c0_ref[l] for l in range(n_layers)]
    ys = []

    # ---- wavefront: step s runs layer l at time t = s - l (static unroll) ---
    for s in range(T + n_layers - 1):
        h_pack = jnp.concatenate(h_state, axis=-1)                  # (B, L*H)
        # One packed MXU pass: every layer's (recurrent + inter-layer input)
        # gate pre-activations for this wavefront step.
        g_all = jnp.dot(h_pack, wpack,
                        preferred_element_type=jnp.float32)         # (B, L*4H)
        if s < T:
            g_all = g_all + gx[s * B:(s + 1) * B, :]                # x-proj + biases
        else:
            g_all = g_all + b_trail                                 # biases only
        # Single full-width sigmoid over all layers' gates (EUP pass #1).
        # g columns were pre-scaled by 2, so tanh(z) = 2*sigmoid(2z) - 1 below.
        sg = jax.nn.sigmoid(g_all)

        for l in range(n_layers):
            t = s - l
            if t < 0 or t >= T:
                continue
            base = l * G
            i_g = sg[:, base + 0 * H: base + 1 * H]
            f_g = sg[:, base + 1 * H: base + 2 * H]
            g_g = 2.0 * sg[:, base + 2 * H: base + 3 * H] - 1.0     # = tanh
            o_g = sg[:, base + 3 * H: base + 4 * H]
            c_new = f_g * c_state[l] + i_g * g_g
            h_new = o_g * jnp.tanh(c_new)                           # EUP pass #2
            c_state[l] = c_new
            h_state[l] = h_new
            if l == n_layers - 1:
                ys.append(h_new)

    # ---- fused fc_out over the whole sequence, single lane-dense store ------
    y_all = jnp.concatenate(ys, axis=0)                             # (T*B, H)
    pred = jnp.dot(y_all, fcw_ref[...],
                   preferred_element_type=jnp.float32)
    pred_ref[...] = pred + jnp.broadcast_to(fcb_ref[...], (T * B, O_PAD))

    for l in range(n_layers):
        hT_ref[l] = h_state[l]
        cT_ref[l] = c_state[l]


# ----------------------------------------------------------------------------
# Wrapper
# ----------------------------------------------------------------------------
@jax.jit
def decoder_forward(x, hidden, cell, params):
    """Mirrors Decoder.forward(input, hidden, cell).

    x:      (B, T, input_dim)   batch_first=True
    hidden: (n_layers, B, hid_dim)
    cell:   (n_layers, B, hid_dim)
    returns (prediction:(B,T,output_dim), hidden, cell)
    """
    B, T, D = x.shape
    n_layers, _, H = hidden.shape
    O = params["fc_w_t"].shape[1]
    G = 4 * H
    LG = n_layers * G
    LH = n_layers * H

    # g-gate pre-scale: tanh(z) = 2*sigmoid(2z) - 1, so multiply the g-gate
    # columns of every weight/bias feeding the packed sigmoid by 2.
    gscale = jnp.concatenate([jnp.ones((2 * H,), jnp.float32),
                              jnp.full((H,), 2.0, jnp.float32),
                              jnp.ones((H,), jnp.float32)])          # (4H,) i,f,g,o
    gscale_full = jnp.tile(gscale, (n_layers,))[None, :]             # (1, L*4H)

    # Packed weights for the wavefront recurrence.
    wih0_pad = jnp.zeros((D, LG), jnp.float32)
    wih0_pad = wih0_pad.at[:, 0:G].set(params["lstm"][0]["wih_t"])
    w_pack = jnp.zeros((LH, LG), jnp.float32)
    b_full = jnp.zeros((1, LG), jnp.float32)
    for l in range(n_layers):
        w_pack = w_pack.at[l * H:(l + 1) * H, l * G:(l + 1) * G].set(
            params["lstm"][l]["whh_t"])
        if l >= 1:
            # Layer l consumes layer l-1's output of the SAME timestep, which
            # is exactly h_state[l-1] when the packed matmul runs (wavefront).
            w_pack = w_pack.at[(l - 1) * H:l * H, l * G:(l + 1) * G].set(
                params["lstm"][l]["wih_t"])
        b_full = b_full.at[:, l * G:(l + 1) * G].set(params["lstm"][l]["b"])
    wih0_pad = wih0_pad * gscale_full
    w_pack = w_pack * gscale_full
    b_full = b_full * gscale_full

    # Lane-dense fc_out: pad output_dim -> 128 lanes (sliced back below).
    fc_w_pad = jnp.zeros((H, O_PAD), jnp.float32).at[:, :O].set(params["fc_w_t"])
    fc_b_pad = jnp.zeros((1, O_PAD), jnp.float32).at[:, :O].set(params["fc_b"])

    # Time-major 2-D slab: per-step slices are contiguous sublane rows.
    x2d = jnp.transpose(x, (1, 0, 2)).reshape(T * B, D)

    kernel = functools.partial(_decoder_kernel, n_layers, T, H)
    out_shape = (jax.ShapeDtypeStruct((T * B, O_PAD), jnp.float32),
                 jax.ShapeDtypeStruct((n_layers, B, H), jnp.float32),
                 jax.ShapeDtypeStruct((n_layers, B, H), jnp.float32))

    # Gridless call: every array is a single VMEM-resident block (<100 KiB,
    # well under the scoped VMEM limit on v5e/v6e/v7x).
    pred2d, h_out, c_out = pl.pallas_call(
        kernel,
        out_shape=out_shape,
        compiler_params=pltpu.CompilerParams(
            vmem_limit_bytes=32 * 1024 * 1024),
    )(x2d, hidden, cell, wih0_pad, b_full, w_pack, fc_w_pad, fc_b_pad)

    pred = pred2d[:, :O].reshape(T, B, O).transpose(1, 0, 2)         # (B, T, O)
    return pred, h_out, c_out


# ----------------------------------------------------------------------------
# Deterministic parameter init (PyTorch-style uniform(-1/sqrt(H), 1/sqrt(H)))
# ----------------------------------------------------------------------------
def init_params(key, input_dim, hid_dim, output_dim, n_layers):
    bound = 1.0 / np.sqrt(hid_dim)
    params = {"lstm": []}
    for l in range(n_layers):
        d_in = input_dim if l == 0 else hid_dim
        key, k1, k2, k3, k4 = jax.random.split(key, 5)
        w_ih = jax.random.uniform(k1, (4 * hid_dim, d_in), jnp.float32,
                                  -bound, bound)
        w_hh = jax.random.uniform(k2, (4 * hid_dim, hid_dim), jnp.float32,
                                  -bound, bound)
        b_ih = jax.random.uniform(k3, (4 * hid_dim,), jnp.float32, -bound, bound)
        b_hh = jax.random.uniform(k4, (4 * hid_dim,), jnp.float32, -bound, bound)
        params["lstm"].append({
            "wih_t": w_ih.T,                       # (d_in, 4H), gate order i,f,g,o
            "whh_t": w_hh.T,                       # (H, 4H)
            "b": (b_ih + b_hh)[None, :],           # (1, 4H)
        })
    key, k1, k2 = jax.random.split(key, 3)
    fc_bound = 1.0 / np.sqrt(hid_dim)
    fc_w = jax.random.uniform(k1, (output_dim, hid_dim), jnp.float32,
                              -fc_bound, fc_bound)
    fc_b = jax.random.uniform(k2, (output_dim,), jnp.float32,
                              -fc_bound, fc_bound)
    params["fc_w_t"] = fc_w.T                      # (H, O)
    params["fc_b"] = fc_b[None, :]                 # (1, O)
    return params


# ----------------------------------------------------------------------------
# Pure-JAX reference (for correctness check) — canonical per-layer LSTM.
# ----------------------------------------------------------------------------
def decoder_reference(x, hidden, cell, params):
    B, T, _ = x.shape
    H = hidden.shape[-1]
    layer_in = x
    h_finals, c_finals = [], []
    for l, p in enumerate(params["lstm"]):
        h = hidden[l]
        c = cell[l]
        ys = []
        for t in range(T):
            gates = layer_in[:, t, :] @ p["wih_t"] + h @ p["whh_t"] + p["b"]
            i_g = jax.nn.sigmoid(gates[:, 0 * H:1 * H])
            f_g = jax.nn.sigmoid(gates[:, 1 * H:2 * H])
            g_g = jnp.tanh(gates[:, 2 * H:3 * H])
            o_g = jax.nn.sigmoid(gates[:, 3 * H:4 * H])
            c = f_g * c + i_g * g_g
            h = o_g * jnp.tanh(c)
            ys.append(h)
        layer_in = jnp.stack(ys, axis=1)
        h_finals.append(h)
        c_finals.append(c)
    pred = layer_in @ params["fc_w_t"] + params["fc_b"]
    return pred, jnp.stack(h_finals), jnp.stack(c_finals)


# ----------------------------------------------------------------------------
if __name__ == "__main__":
    # Module hyper-parameters (small, consistent with Decoder.__init__)
    output_dim = 24
    input_dim = 16
    hid_dim = 32
    n_layers = 2
    dropout = 0.0  # eval-mode forward; dropout unused in forward()

    B, T = 2, 8

    key = jax.random.PRNGKey(0)
    kp, kx, kh, kc = jax.random.split(key, 4)
    params = init_params(kp, input_dim, hid_dim, output_dim, n_layers)

    x = jax.random.normal(kx, (B, T, input_dim), jnp.float32)
    hidden = jax.random.normal(kh, (n_layers, B, hid_dim), jnp.float32)
    cell = jax.random.normal(kc, (n_layers, B, hid_dim), jnp.float32)

    pred, h_out, c_out = decoder_forward(x, hidden, cell, params)
    jax.block_until_ready((pred, h_out, c_out))

    # Correctness check against a pure-JAX reference implementation.
    pred_r, h_r, c_r = decoder_reference(x, hidden, cell, params)
    np.testing.assert_allclose(np.asarray(pred), np.asarray(pred_r),
                               rtol=2e-5, atol=2e-5)
    np.testing.assert_allclose(np.asarray(h_out), np.asarray(h_r),
                               rtol=2e-5, atol=2e-5)
    np.testing.assert_allclose(np.asarray(c_out), np.asarray(c_r),
                               rtol=2e-5, atol=2e-5)

    assert pred.shape == (B, T, output_dim)
    assert h_out.shape == (n_layers, B, hid_dim)
    assert c_out.shape == (n_layers, B, hid_dim)

    print("KERNEL_OK")
</pallas_src>

<mosaic_0001>
module attributes {stable_mosaic.version = 11 : i64} {
  func.func @_decoder_kernel(%arg0: memref<16x16xf32, #tpu.memory_space<vmem>>, %arg1: memref<2x2x32xf32, #tpu.memory_space<vmem>>, %arg2: memref<2x2x32xf32, #tpu.memory_space<vmem>>, %arg3: memref<16x256xf32, #tpu.memory_space<vmem>>, %arg4: memref<1x256xf32, #tpu.memory_space<vmem>>, %arg5: memref<64x256xf32, #tpu.memory_space<vmem>>, %arg6: memref<32x128xf32, #tpu.memory_space<vmem>>, %arg7: memref<1x128xf32, #tpu.memory_space<vmem>>, %arg8: memref<16x128xf32, #tpu.memory_space<vmem>>, %arg9: memref<2x2x32xf32, #tpu.memory_space<vmem>>, %arg10: memref<2x2x32xf32, #tpu.memory_space<vmem>>) attributes {dimension_semantics = [], scalar_prefetch = 0 : i64, scratch_operands = 0 : i64, tpu.core_type = #tpu.core_type<tc>} {
    %c0 = arith.constant 0 : index
    %c0_0 = arith.constant 0 : index
    %0 = vector.load %arg0[%c0, %c0_0] : memref<16x16xf32, #tpu.memory_space<vmem>>, vector<16x16xf32>
    %c0_1 = arith.constant 0 : index
    %c0_2 = arith.constant 0 : index
    %1 = vector.load %arg3[%c0_1, %c0_2] : memref<16x256xf32, #tpu.memory_space<vmem>>, vector<16x256xf32>
    %cst = arith.constant dense<0.000000e+00> : vector<16x256xf32>
    %2 = tpu.matmul %0, %1, %cst {dimension_numbers = #tpu.dot_dimension_numbers<[1], [0], [0], [1], [0, 0, 1, 1], [], []>} : vector<16x16xf32>, vector<16x256xf32>, vector<16x256xf32> -> vector<16x256xf32>
    %c0_3 = arith.constant 0 : index
    %c0_4 = arith.constant 0 : index
    %3 = vector.load %arg4[%c0_3, %c0_4] : memref<1x256xf32, #tpu.memory_space<vmem>>, vector<1x256xf32>
    %4 = vector.shape_cast %3 : vector<1x256xf32> to vector<1x256xf32>
    %5 = vector.broadcast %4 : vector<1x256xf32> to vector<16x256xf32>
    %6 = arith.addf %2, %5 : vector<16x256xf32>
    %c0_5 = arith.constant 0 : index
    %c0_6 = arith.constant 0 : index
    %7 = vector.load %arg5[%c0_5, %c0_6] : memref<64x256xf32, #tpu.memory_space<vmem>>, vector<64x256xf32>
    %c0_7 = arith.constant 0 : index
    %c0_8 = arith.constant 0 : index
    %8 = vector.load %arg4[%c0_7, %c0_8] : memref<1x256xf32, #tpu.memory_space<vmem>>, vector<1x256xf32>
    %9 = vector.shape_cast %8 : vector<1x256xf32> to vector<1x256xf32>
    %10 = vector.broadcast %9 : vector<1x256xf32> to vector<2x256xf32>
    %c0_9 = arith.constant 0 : index
    %c0_10 = arith.constant 0 : index
    %c0_11 = arith.constant 0 : index
    %11 = vector.load %arg1[%c0_9, %c0_10, %c0_11] : memref<2x2x32xf32, #tpu.memory_space<vmem>>, vector<1x2x32xf32>
    %12 = vector.shape_cast %11 : vector<1x2x32xf32> to vector<2x32xf32>
    %c1 = arith.constant 1 : index
    %c0_12 = arith.constant 0 : index
    %c0_13 = arith.constant 0 : index
    %13 = vector.load %arg1[%c1, %c0_12, %c0_13] : memref<2x2x32xf32, #tpu.memory_space<vmem>>, vector<1x2x32xf32>
    %14 = vector.shape_cast %13 : vector<1x2x32xf32> to vector<2x32xf32>
    %c0_14 = arith.constant 0 : index
    %c0_15 = arith.constant 0 : index
    %c0_16 = arith.constant 0 : index
    %15 = vector.load %arg2[%c0_14, %c0_15, %c0_16] : memref<2x2x32xf32, #tpu.memory_space<vmem>>, vector<1x2x32xf32>
    %16 = vector.shape_cast %15 : vector<1x2x32xf32> to vector<2x32xf32>
    %c1_17 = arith.constant 1 : index
    %c0_18 = arith.constant 0 : index
    %c0_19 = arith.constant 0 : index
    %17 = vector.load %arg2[%c1_17, %c0_18, %c0_19] : memref<2x2x32xf32, #tpu.memory_space<vmem>>, vector<1x2x32xf32>
    %18 = vector.shape_cast %17 : vector<1x2x32xf32> to vector<2x32xf32>
    %19 = tpu.concatenate %12, %14 in 1 : vector<2x32xf32>, vector<2x32xf32> -> vector<2x64xf32>
    %cst_20 = arith.constant dense<0.000000e+00> : vector<2x256xf32>
    %20 = tpu.matmul %19, %7, %cst_20 {dimension_numbers = #tpu.dot_dimension_numbers<[1], [0], [0], [1], [0, 0, 1, 1], [], []>} : vector<2x64xf32>, vector<64x256xf32>, vector<2x256xf32> -> vector<2x256xf32>
    %21 = vector.extract_strided_slice %6 {offsets = [0, 0], sizes = [2, 256], strides = [1, 1]} : vector<16x256xf32> to vector<2x256xf32>
    %22 = arith.addf %20, %21 : vector<2x256xf32>
    %23 = arith.negf %22 : vector<2x256xf32>
    %24 = math.exp %23 : vector<2x256xf32>
    %cst_21 = arith.constant 1.000000e+00 : f32
    %25 = vector.broadcast %cst_21 : f32 to vector<2x256xf32>
    %26 = arith.addf %25, %24 : vector<2x256xf32>
    %27 = arith.divf %25, %26 : vector<2x256xf32>
    %28 = vector.extract_strided_slice %27 {offsets = [0, 0], sizes = [2, 32], strides = [1, 1]} : vector<2x256xf32> to vector<2x32xf32>
    %29 = vector.extract_strided_slice %27 {offsets = [0, 32], sizes = [2, 32], strides = [1, 1]} : vector<2x256xf32> to vector<2x32xf32>
    %30 = vector.extract_strided_slice %27 {offsets = [0, 64], sizes = [2, 32], strides = [1, 1]} : vector<2x256xf32> to vector<2x32xf32>
    %cst_22 = arith.constant 2.000000e+00 : f32
    %31 = vector.broadcast %cst_22 : f32 to vector<2x32xf32>
    %32 = arith.mulf %31, %30 : vector<2x32xf32>
    %cst_23 = arith.constant 1.000000e+00 : f32
    %33 = vector.broadcast %cst_23 : f32 to vector<2x32xf32>
    %34 = arith.subf %32, %33 : vector<2x32xf32>
    %35 = vector.extract_strided_slice %27 {offsets = [0, 96], sizes = [2, 32], strides = [1, 1]} : vector<2x256xf32> to vector<2x32xf32>
    %36 = arith.mulf %29, %16 : vector<2x32xf32>
    %37 = arith.mulf %28, %34 : vector<2x32xf32>
    %38 = arith.addf %36, %37 : vector<2x32xf32>
    %39 = math.tanh %38 : vector<2x32xf32>
    %40 = arith.mulf %35, %39 : vector<2x32xf32>
    %41 = tpu.concatenate %40, %14 in 1 : vector<2x32xf32>, vector<2x32xf32> -> vector<2x64xf32>
    %cst_24 = arith.constant dense<0.000000e+00> : vector<2x256xf32>
    %42 = tpu.matmul %41, %7, %cst_24 {dimension_numbers = #tpu.dot_dimension_numbers<[1], [0], [0], [1], [0, 0, 1, 1], [], []>} : vector<2x64xf32>, vector<64x256xf32>, vector<2x256xf32> -> vector<2x256xf32>
    %43 = vector.extract_strided_slice %6 {offsets = [2, 0], sizes = [2, 256], strides = [1, 1]} : vector<16x256xf32> to vector<2x256xf32>
    %44 = arith.addf %42, %43 : vector<2x256xf32>
    %45 = arith.negf %44 : vector<2x256xf32>
    %46 = math.exp %45 : vector<2x256xf32>
    %cst_25 = arith.constant 1.000000e+00 : f32
    %47 = vector.broadcast %cst_25 : f32 to vector<2x256xf32>
    %48 = arith.addf %47, %46 : vector<2x256xf32>
    %49 = arith.divf %47, %48 : vector<2x256xf32>
    %50 = vector.extract_strided_slice %49 {offsets = [0, 0], sizes = [2, 32], strides = [1, 1]} : vector<2x256xf32> to vector<2x32xf32>
    %51 = vector.extract_strided_slice %49 {offsets = [0, 32], sizes = [2, 32], strides = [1, 1]} : vector<2x256xf32> to vector<2x32xf32>
    %52 = vector.extract_strided_slice %49 {offsets = [0, 64], sizes = [2, 32], strides = [1, 1]} : vector<2x256xf32> to vector<2x32xf32>
    %cst_26 = arith.constant 2.000000e+00 : f32
    %53 = vector.broadcast %cst_26 : f32 to vector<2x32xf32>
    %54 = arith.mulf %53, %52 : vector<2x32xf32>
    %cst_27 = arith.constant 1.000000e+00 : f32
    %55 = vector.broadcast %cst_27 : f32 to vector<2x32xf32>
    %56 = arith.subf %54, %55 : vector<2x32xf32>
    %57 = vector.extract_strided_slice %49 {offsets = [0, 96], sizes = [2, 32], strides = [1, 1]} : vector<2x256xf32> to vector<2x32xf32>
    %58 = arith.mulf %51, %38 : vector<2x32xf32>
    %59 = arith.mulf %50, %56 : vector<2x32xf32>
    %60 = arith.addf %58, %59 : vector<2x32xf32>
    %61 = math.tanh %60 : vector<2x32xf32>
    %62 = arith.mulf %57, %61 : vector<2x32xf32>
    %63 = vector.extract_strided_slice %49 {offsets = [0, 128], sizes = [2, 32], strides = [1, 1]} : vector<2x256xf32> to vector<2x32xf32>
    %64 = vector.extract_strided_slice %49 {offsets = [0, 160], sizes = [2, 32], strides = [1, 1]} : vector<2x256xf32> to vector<2x32xf32>
    %65 = vector.extract_strided_slice %49 {offsets = [0, 192], sizes = [2, 32], strides = [1, 1]} : vector<2x256xf32> to vector<2x32xf32>
    %cst_28 = arith.constant 2.000000e+00 : f32
    %66 = vector.broadcast %cst_28 : f32 to vector<2x32xf32>
    %67 = arith.mulf %66, %65 : vector<2x32xf32>
    %cst_29 = arith.constant 1.000000e+00 : f32
    %68 = vector.broadcast %cst_29 : f32 to vector<2x32xf32>
    %69 = arith.subf %67, %68 : vector<2x32xf32>
    %70 = vector.extract_strided_slice %49 {offsets = [0, 224], sizes = [2, 32], strides = [1, 1]} : vector<2x256xf32> to vector<2x32xf32>
    %71 = arith.mulf %64, %18 : vector<2x32xf32>
    %72 = arith.mulf %63, %69 : vector<2x32xf32>
    %73 = arith.addf %71, %72 : vector<2x32xf32>
    %74 = math.tanh %73 : vector<2x32xf32>
    %75 = arith.mulf %70, %74 : vector<2x32xf32>
    %76 = tpu.concatenate %62, %75 in 1 : vector<2x32xf32>, vector<2x32xf32> -> vector<2x64xf32>
    %cst_30 = arith.constant dense<0.000000e+00> : vector<2x256xf32>
    %77 = tpu.matmul %76, %7, %cst_30 {dimension_numbers = #tpu.dot_dimension_numbers<[1], [0], [0], [1], [0, 0, 1, 1], [], []>} : vector<2x64xf32>, vector<64x256xf32>, vector<2x256xf32> -> vector<2x256xf32>
    %78 = vector.extract_strided_slice %6 {offsets = [4, 0], sizes = [2, 256], strides = [1, 1]} : vector<16x256xf32> to vector<2x256xf32>
    %79 = arith.addf %77, %78 : vector<2x256xf32>
    %80 = arith.negf %79 : vector<2x256xf32>
    %81 = math.exp %80 : vector<2x256xf32>
    %cst_31 = arith.constant 1.000000e+00 : f32
    %82 = vector.broadcast %cst_31 : f32 to vector<2x256xf32>
    %83 = arith.addf %82, %81 : vector<2x256xf32>
    %84 = arith.divf %82, %83 : vector<2x256xf32>
    %85 = vector.extract_strided_slice %84 {offsets = [0, 0], sizes = [2, 32], strides = [1, 1]} : vector<2x256xf32> to vector<2x32xf32>
    %86 = vector.extract_strided_slice %84 {offsets = [0, 32], sizes = [2, 32], strides = [1, 1]} : vector<2x256xf32> to vector<2x32xf32>
    %87 = vector.extract_strided_slice %84 {offsets = [0, 64], sizes = [2, 32], strides = [1, 1]} : vector<2x256xf32> to vector<2x32xf32>
    %cst_32 = arith.constant 2.000000e+00 : f32
    %88 = vector.broadcast %cst_32 : f32 to vector<2x32xf32>
    %89 = arith.mulf %88, %87 : vector<2x32xf32>
    %cst_33 = arith.constant 1.000000e+00 : f32
    %90 = vector.broadcast %cst_33 : f32 to vector<2x32xf32>
    %91 = arith.subf %89, %90 : vector<2x32xf32>
    %92 = vector.extract_strided_slice %84 {offsets = [0, 96], sizes = [2, 32], strides = [1, 1]} : vector<2x256xf32> to vector<2x32xf32>
    %93 = arith.mulf %86, %60 : vector<2x32xf32>
    %94 = arith.mulf %85, %91 : vector<2x32xf32>
    %95 = arith.addf %93, %94 : vector<2x32xf32>
    %96 = math.tanh %95 : vector<2x32xf32>
    %97 = arith.mulf %92, %96 : vector<2x32xf32>
    %98 = vector.extract_strided_slice %84 {offsets = [0, 128], sizes = [2, 32], strides = [1, 1]} : vector<2x256xf32> to vector<2x32xf32>
    %99 = vector.extract_strided_slice %84 {offsets = [0, 160], sizes = [2, 32], strides = [1, 1]} : vector<2x256xf32> to vector<2x32xf32>
    %100 = vector.extract_strided_slice %84 {offsets = [0, 192], sizes = [2, 32], strides = [1, 1]} : vector<2x256xf32> to vector<2x32xf32>
    %cst_34 = arith.constant 2.000000e+00 : f32
    %101 = vector.broadcast %cst_34 : f32 to vector<2x32xf32>
    %102 = arith.mulf %101, %100 : vector<2x32xf32>
    %cst_35 = arith.constant 1.000000e+00 : f32
    %103 = vector.broadcast %cst_35 : f32 to vector<2x32xf32>
    %104 = arith.subf %102, %103 : vector<2x32xf32>
    %105 = vector.extract_strided_slice %84 {offsets = [0, 224], sizes = [2, 32], strides = [1, 1]} : vector<2x256xf32> to vector<2x32xf32>
    %106 = arith.mulf %99, %73 : vector<2x32xf32>
    %107 = arith.mulf %98, %104 : vector<2x32xf32>
    %108 = arith.addf %106, %107 : vector<2x32xf32>
    %109 = math.tanh %108 : vector<2x32xf32>
    %110 = arith.mulf %105, %109 : vector<2x32xf32>
    %111 = tpu.concatenate %97, %110 in 1 : vector<2x32xf32>, vector<2x32xf32> -> vector<2x64xf32>
    %cst_36 = arith.constant dense<0.000000e+00> : vector<2x256xf32>
    %112 = tpu.matmul %111, %7, %cst_36 {dimension_numbers = #tpu.dot_dimension_numbers<[1], [0], [0], [1], [0, 0, 1, 1], [], []>} : vector<2x64xf32>, vector<64x256xf32>, vector<2x256xf32> -> vector<2x256xf32>
    %113 = vector.extract_strided_slice %6 {offsets = [6, 0], sizes = [2, 256], strides = [1, 1]} : vector<16x256xf32> to vector<2x256xf32>
    %114 = arith.addf %112, %113 : vector<2x256xf32>
    %115 = arith.negf %114 : vector<2x256xf32>
    %116 = math.exp %115 : vector<2x256xf32>
    %cst_37 = arith.constant 1.000000e+00 : f32
    %117 = vector.broadcast %cst_37 : f32 to vector<2x256xf32>
    %118 = arith.addf %117, %116 : vector<2x256xf32>
    %119 = arith.divf %117, %118 : vector<2x256xf32>
    %120 = vector.extract_strided_slice %119 {offsets = [0, 0], sizes = [2, 32], strides = [1, 1]} : vector<2x256xf32> to vector<2x32xf32>
    %121 = vector.extract_strided_slice %119 {offsets = [0, 32], sizes = [2, 32], strides = [1, 1]} : vector<2x256xf32> to vector<2x32xf32>
    %122 = vector.extract_strided_slice %119 {offsets = [0, 64], sizes = [2, 32], strides = [1, 1]} : vector<2x256xf32> to vector<2x32xf32>
    %cst_38 = arith.constant 2.000000e+00 : f32
    %123 = vector.broadcast %cst_38 : f32 to vector<2x32xf32>
    %124 = arith.mulf %123, %122 : vector<2x32xf32>
    %cst_39 = arith.constant 1.000000e+00 : f32
    %125 = vector.broadcast %cst_39 : f32 to vector<2x32xf32>
    %126 = arith.subf %124, %125 : vector<2x32xf32>
    %127 = vector.extract_strided_slice %119 {offsets = [0, 96], sizes = [2, 32], strides = [1, 1]} : vector<2x256xf32> to vector<2x32xf32>
    %128 = arith.mulf %121, %95 : vector<2x32xf32>
    %129 = arith.mulf %120, %126 : vector<2x32xf32>
    %130 = arith.addf %128, %129 : vector<2x32xf32>
    %131 = math.tanh %130 : vector<2x32xf32>
    %132 = arith.mulf %127, %131 : vector<2x32xf32>
    %133 = vector.extract_strided_slice %119 {offsets = [0, 128], sizes = [2, 32], strides = [1, 1]} : vector<2x256xf32> to vector<2x32xf32>
    %134 = vector.extract_strided_slice %119 {offsets = [0, 160], sizes = [2, 32], strides = [1, 1]} : vector<2x256xf32> to vector<2x32xf32>
    %135 = vector.extract_strided_slice %119 {offsets = [0, 192], sizes = [2, 32], strides = [1, 1]} : vector<2x256xf32> to vector<2x32xf32>
    %cst_40 = arith.constant 2.000000e+00 : f32
    %136 = vector.broadcast %cst_40 : f32 to vector<2x32xf32>
    %137 = arith.mulf %136, %135 : vector<2x32xf32>
    %cst_41 = arith.constant 1.000000e+00 : f32
    %138 = vector.broadcast %cst_41 : f32 to vector<2x32xf32>
    %139 = arith.subf %137, %138 : vector<2x32xf32>
    %140 = vector.extract_strided_slice %119 {offsets = [0, 224], sizes = [2, 32], strides = [1, 1]} : vector<2x256xf32> to vector<2x32xf32>
    %141 = arith.mulf %134, %108 : vector<2x32xf32>
    %142 = arith.mulf %133, %139 : vector<2x32xf32>
    %143 = arith.addf %141, %142 : vector<2x32xf32>
    %144 = math.tanh %143 : vector<2x32xf32>
    %145 = arith.mulf %140, %144 : vector<2x32xf32>
    %146 = tpu.concatenate %132, %145 in 1 : vector<2x32xf32>, vector<2x32xf32> -> vector<2x64xf32>
    %cst_42 = arith.constant dense<0.000000e+00> : vector<2x256xf32>
    %147 = tpu.matmul %146, %7, %cst_42 {dimension_numbers = #tpu.dot_dimension_numbers<[1], [0], [0], [1], [0, 0, 1, 1], [], []>} : vector<2x64xf32>, vector<64x256xf32>, vector<2x256xf32> -> vector<2x256xf32>
    %148 = vector.extract_strided_slice %6 {offsets = [8, 0], sizes = [2, 256], strides = [1, 1]} : vector<16x256xf32> to vector<2x256xf32>
    %149 = arith.addf %147, %148 : vector<2x256xf32>
    %150 = arith.negf %149 : vector<2x256xf32>
    %151 = math.exp %150 : vector<2x256xf32>
    %cst_43 = arith.constant 1.000000e+00 : f32
    %152 = vector.broadcast %cst_43 : f32 to vector<2x256xf32>
    %153 = arith.addf %152, %151 : vector<2x256xf32>
    %154 = arith.divf %152, %153 : vector<2x256xf32>
    %155 = vector.extract_strided_slice %154 {offsets = [0, 0], sizes = [2, 32], strides = [1, 1]} : vector<2x256xf32> to vector<2x32xf32>
    %156 = vector.extract_strided_slice %154 {offsets = [0, 32], sizes = [2, 32], strides = [1, 1]} : vector<2x256xf32> to vector<2x32xf32>
    %157 = vector.extract_strided_slice %154 {offsets = [0, 64], sizes = [2, 32], strides = [1, 1]} : vector<2x256xf32> to vector<2x32xf32>
    %cst_44 = arith.constant 2.000000e+00 : f32
    %158 = vector.broadcast %cst_44 : f32 to vector<2x32xf32>
    %159 = arith.mulf %158, %157 : vector<2x32xf32>
    %cst_45 = arith.constant 1.000000e+00 : f32
    %160 = vector.broadcast %cst_45 : f32 to vector<2x32xf32>
    %161 = arith.subf %159, %160 : vector<2x32xf32>
    %162 = vector.extract_strided_slice %154 {offsets = [0, 96], sizes = [2, 32], strides = [1, 1]} : vector<2x256xf32> to vector<2x32xf32>
    %163 = arith.mulf %156, %130 : vector<2x32xf32>
    %164 = arith.mulf %155, %161 : vector<2x32xf32>
    %165 = arith.addf %163, %164 : vector<2x32xf32>
    %166 = math.tanh %165 : vector<2x32xf32>
    %167 = arith.mulf %162, %166 : vector<2x32xf32>
    %168 = vector.extract_strided_slice %154 {offsets = [0, 128], sizes = [2, 32], strides = [1, 1]} : vector<2x256xf32> to vector<2x32xf32>
    %169 = vector.extract_strided_slice %154 {offsets = [0, 160], sizes = [2, 32], strides = [1, 1]} : vector<2x256xf32> to vector<2x32xf32>
    %170 = vector.extract_strided_slice %154 {offsets = [0, 192], sizes = [2, 32], strides = [1, 1]} : vector<2x256xf32> to vector<2x32xf32>
    %cst_46 = arith.constant 2.000000e+00 : f32
    %171 = vector.broadcast %cst_46 : f32 to vector<2x32xf32>
    %172 = arith.mulf %171, %170 : vector<2x32xf32>
    %cst_47 = arith.constant 1.000000e+00 : f32
    %173 = vector.broadcast %cst_47 : f32 to vector<2x32xf32>
    %174 = arith.subf %172, %173 : vector<2x32xf32>
    %175 = vector.extract_strided_slice %154 {offsets = [0, 224], sizes = [2, 32], strides = [1, 1]} : vector<2x256xf32> to vector<2x32xf32>
    %176 = arith.mulf %169, %143 : vector<2x32xf32>
    %177 = arith.mulf %168, %174 : vector<2x32xf32>
    %178 = arith.addf %176, %177 : vector<2x32xf32>
    %179 = math.tanh %178 : vector<2x32xf32>
    %180 = arith.mulf %175, %179 : vector<2x32xf32>
    %181 = tpu.concatenate %167, %180 in 1 : vector<2x32xf32>, vector<2x32xf32> -> vector<2x64xf32>
    %cst_48 = arith.constant dense<0.000000e+00> : vector<2x256xf32>
    %182 = tpu.matmul %181, %7, %cst_48 {dimension_numbers = #tpu.dot_dimension_numbers<[1], [0], [0], [1], [0, 0, 1, 1], [], []>} : vector<2x64xf32>, vector<64x256xf32>, vector<2x256xf32> -> vector<2x256xf32>
    %183 = vector.extract_strided_slice %6 {offsets = [10, 0], sizes = [2, 256], strides = [1, 1]} : vector<16x256xf32> to vector<2x256xf32>
    %184 = arith.addf %182, %183 : vector<2x256xf32>
    %185 = arith.negf %184 : vector<2x256xf32>
    %186 = math.exp %185 : vector<2x256xf32>
    %cst_49 = arith.constant 1.000000e+00 : f32
    %187 = vector.broadcast %cst_49 : f32 to vector<2x256xf32>
    %188 = arith.addf %187, %186 : vector<2x256xf32>
    %189 = arith.divf %187, %188 : vector<2x256xf32>
    %190 = vector.extract_strided_slice %189 {offsets = [0, 0], sizes = [2, 32], strides = [1, 1]} : vector<2x256xf32> to vector<2x32xf32>
    %191 = vector.extract_strided_slice %189 {offsets = [0, 32], sizes = [2, 32], strides = [1, 1]} : vector<2x256xf32> to vector<2x32xf32>
    %192 = vector.extract_strided_slice %189 {offsets = [0, 64], sizes = [2, 32], strides = [1, 1]} : vector<2x256xf32> to vector<2x32xf32>
    %cst_50 = arith.constant 2.000000e+00 : f32
    %193 = vector.broadcast %cst_50 : f32 to vector<2x32xf32>
    %194 = arith.mulf %193, %192 : vector<2x32xf32>
    %cst_51 = arith.constant 1.000000e+00 : f32
    %195 = vector.broadcast %cst_51 : f32 to vector<2x32xf32>
    %196 = arith.subf %194, %195 : vector<2x32xf32>
    %197 = vector.extract_strided_slice %189 {offsets = [0, 96], sizes = [2, 32], strides = [1, 1]} : vector<2x256xf32> to vector<2x32xf32>
    %198 = arith.mulf %191, %165 : vector<2x32xf32>
    %199 = arith.mulf %190, %196 : vector<2x32xf32>
    %200 = arith.addf %198, %199 : vector<2x32xf32>
    %201 = math.tanh %200 : vector<2x32xf32>
    %202 = arith.mulf %197, %201 : vector<2x32xf32>
    %203 = vector.extract_strided_slice %189 {offsets = [0, 128], sizes = [2, 32], strides = [1, 1]} : vector<2x256xf32> to vector<2x32xf32>
    %204 = vector.extract_strided_slice %189 {offsets = [0, 160], sizes = [2, 32], strides = [1, 1]} : vector<2x256xf32> to vector<2x32xf32>
    %205 = vector.extract_strided_slice %189 {offsets = [0, 192], sizes = [2, 32], strides = [1, 1]} : vector<2x256xf32> to vector<2x32xf32>
    %cst_52 = arith.constant 2.000000e+00 : f32
    %206 = vector.broadcast %cst_52 : f32 to vector<2x32xf32>
    %207 = arith.mulf %206, %205 : vector<2x32xf32>
    %cst_53 = arith.constant 1.000000e+00 : f32
    %208 = vector.broadcast %cst_53 : f32 to vector<2x32xf32>
    %209 = arith.subf %207, %208 : vector<2x32xf32>
    %210 = vector.extract_strided_slice %189 {offsets = [0, 224], sizes = [2, 32], strides = [1, 1]} : vector<2x256xf32> to vector<2x32xf32>
    %211 = arith.mulf %204, %178 : vector<2x32xf32>
    %212 = arith.mulf %203, %209 : vector<2x32xf32>
    %213 = arith.addf %211, %212 : vector<2x32xf32>
    %214 = math.tanh %213 : vector<2x32xf32>
    %215 = arith.mulf %210, %214 : vector<2x32xf32>
    %216 = tpu.concatenate %202, %215 in 1 : vector<2x32xf32>, vector<2x32xf32> -> vector<2x64xf32>
    %cst_54 = arith.constant dense<0.000000e+00> : vector<2x256xf32>
    %217 = tpu.matmul %216, %7, %cst_54 {dimension_numbers = #tpu.dot_dimension_numbers<[1], [0], [0], [1], [0, 0, 1, 1], [], []>} : vector<2x64xf32>, vector<64x256xf32>, vector<2x256xf32> -> vector<2x256xf32>
    %218 = vector.extract_strided_slice %6 {offsets = [12, 0], sizes = [2, 256], strides = [1, 1]} : vector<16x256xf32> to vector<2x256xf32>
    %219 = arith.addf %217, %218 : vector<2x256xf32>
    %220 = arith.negf %219 : vector<2x256xf32>
    %221 = math.exp %220 : vector<2x256xf32>
    %cst_55 = arith.constant 1.000000e+00 : f32
    %222 = vector.broadcast %cst_55 : f32 to vector<2x256xf32>
    %223 = arith.addf %222, %221 : vector<2x256xf32>
    %224 = arith.divf %222, %223 : vector<2x256xf32>
    %225 = vector.extract_strided_slice %224 {offsets = [0, 0], sizes = [2, 32], strides = [1, 1]} : vector<2x256xf32> to vector<2x32xf32>
    %226 = vector.extract_strided_slice %224 {offsets = [0, 32], sizes = [2, 32], strides = [1, 1]} : vector<2x256xf32> to vector<2x32xf32>
    %227 = vector.extract_strided_slice %224 {offsets = [0, 64], sizes = [2, 32], strides = [1, 1]} : vector<2x256xf32> to vector<2x32xf32>
    %cst_56 = arith.constant 2.000000e+00 : f32
    %228 = vector.broadcast %cst_56 : f32 to vector<2x32xf32>
    %229 = arith.mulf %228, %227 : vector<2x32xf32>
    %cst_57 = arith.constant 1.000000e+00 : f32
    %230 = vector.broadcast %cst_57 : f32 to vector<2x32xf32>
    %231 = arith.subf %229, %230 : vector<2x32xf32>
    %232 = vector.extract_strided_slice %224 {offsets = [0, 96], sizes = [2, 32], strides = [1, 1]} : vector<2x256xf32> to vector<2x32xf32>
    %233 = arith.mulf %226, %200 : vector<2x32xf32>
    %234 = arith.mulf %225, %231 : vector<2x32xf32>
    %235 = arith.addf %233, %234 : vector<2x32xf32>
    %236 = math.tanh %235 : vector<2x32xf32>
    %237 = arith.mulf %232, %236 : vector<2x32xf32>
    %238 = vector.extract_strided_slice %224 {offsets = [0, 128], sizes = [2, 32], strides = [1, 1]} : vector<2x256xf32> to vector<2x32xf32>
    %239 = vector.extract_strided_slice %224 {offsets = [0, 160], sizes = [2, 32], strides = [1, 1]} : vector<2x256xf32> to vector<2x32xf32>
    %240 = vector.extract_strided_slice %224 {offsets = [0, 192], sizes = [2, 32], strides = [1, 1]} : vector<2x256xf32> to vector<2x32xf32>
    %cst_58 = arith.constant 2.000000e+00 : f32
    %241 = vector.broadcast %cst_58 : f32 to vector<2x32xf32>
    %242 = arith.mulf %241, %240 : vector<2x32xf32>
    %cst_59 = arith.constant 1.000000e+00 : f32
    %243 = vector.broadcast %cst_59 : f32 to vector<2x32xf32>
    %244 = arith.subf %242, %243 : vector<2x32xf32>
    %245 = vector.extract_strided_slice %224 {offsets = [0, 224], sizes = [2, 32], strides = [1, 1]} : vector<2x256xf32> to vector<2x32xf32>
    %246 = arith.mulf %239, %213 : vector<2x32xf32>
    %247 = arith.mulf %238, %244 : vector<2x32xf32>
    %248 = arith.addf %246, %247 : vector<2x32xf32>
    %249 = math.tanh %248 : vector<2x32xf32>
    %250 = arith.mulf %245, %249 : vector<2x32xf32>
    %251 = tpu.concatenate %237, %250 in 1 : vector<2x32xf32>, vector<2x32xf32> -> vector<2x64xf32>
    %cst_60 = arith.constant dense<0.000000e+00> : vector<2x256xf32>
    %252 = tpu.matmul %251, %7, %cst_60 {dimension_numbers = #tpu.dot_dimension_numbers<[1], [0], [0], [1], [0, 0, 1, 1], [], []>} : vector<2x64xf32>, vector<64x256xf32>, vector<2x256xf32> -> vector<2x256xf32>
    %253 = vector.extract_strided_slice %6 {offsets = [14, 0], sizes = [2, 256], strides = [1, 1]} : vector<16x256xf32> to vector<2x256xf32>
    %254 = arith.addf %252, %253 : vector<2x256xf32>
    %255 = arith.negf %254 : vector<2x256xf32>
    %256 = math.exp %255 : vector<2x256xf32>
    %cst_61 = arith.constant 1.000000e+00 : f32
    %257 = vector.broadcast %cst_61 : f32 to vector<2x256xf32>
    %258 = arith.addf %257, %256 : vector<2x256xf32>
    %259 = arith.divf %257, %258 : vector<2x256xf32>
    %260 = vector.extract_strided_slice %259 {offsets = [0, 0], sizes = [2, 32], strides = [1, 1]} : vector<2x256xf32> to vector<2x32xf32>
    %261 = vector.extract_strided_slice %259 {offsets = [0, 32], sizes = [2, 32], strides = [1, 1]} : vector<2x256xf32> to vector<2x32xf32>
    %262 = vector.extract_strided_slice %259 {offsets = [0, 64], sizes = [2, 32], strides = [1, 1]} : vector<2x256xf32> to vector<2x32xf32>
    %cst_62 = arith.constant 2.000000e+00 : f32
    %263 = vector.broadcast %cst_62 : f32 to vector<2x32xf32>
    %264 = arith.mulf %263, %262 : vector<2x32xf32>
    %cst_63 = arith.constant 1.000000e+00 : f32
    %265 = vector.broadcast %cst_63 : f32 to vector<2x32xf32>
    %266 = arith.subf %264, %265 : vector<2x32xf32>
    %267 = vector.extract_strided_slice %259 {offsets = [0, 96], sizes = [2, 32], strides = [1, 1]} : vector<2x256xf32> to vector<2x32xf32>
    %268 = arith.mulf %261, %235 : vector<2x32xf32>
    %269 = arith.mulf %260, %266 : vector<2x32xf32>
    %270 = arith.addf %268, %269 : vector<2x32xf32>
    %271 = math.tanh %270 : vector<2x32xf32>
    %272 = arith.mulf %267, %271 : vector<2x32xf32>
    %273 = vector.extract_strided_slice %259 {offsets = [0, 128], sizes = [2, 32], strides = [1, 1]} : vector<2x256xf32> to vector<2x32xf32>
    %274 = vector.extract_strided_slice %259 {offsets = [0, 160], sizes = [2, 32], strides = [1, 1]} : vector<2x256xf32> to vector<2x32xf32>
    %275 = vector.extract_strided_slice %259 {offsets = [0, 192], sizes = [2, 32], strides = [1, 1]} : vector<2x256xf32> to vector<2x32xf32>
    %cst_64 = arith.constant 2.000000e+00 : f32
    %276 = vector.broadcast %cst_64 : f32 to vector<2x32xf32>
    %277 = arith.mulf %276, %275 : vector<2x32xf32>
    %cst_65 = arith.constant 1.000000e+00 : f32
    %278 = vector.broadcast %cst_65 : f32 to vector<2x32xf32>
    %279 = arith.subf %277, %278 : vector<2x32xf32>
    %280 = vector.extract_strided_slice %259 {offsets = [0, 224], sizes = [2, 32], strides = [1, 1]} : vector<2x256xf32> to vector<2x32xf32>
    %281 = arith.mulf %274, %248 : vector<2x32xf32>
    %282 = arith.mulf %273, %279 : vector<2x32xf32>
    %283 = arith.addf %281, %282 : vector<2x32xf32>
    %284 = math.tanh %283 : vector<2x32xf32>
    %285 = arith.mulf %280, %284 : vector<2x32xf32>
    %286 = tpu.concatenate %272, %285 in 1 : vector<2x32xf32>, vector<2x32xf32> -> vector<2x64xf32>
    %cst_66 = arith.constant dense<0.000000e+00> : vector<2x256xf32>
    %287 = tpu.matmul %286, %7, %cst_66 {dimension_numbers = #tpu.dot_dimension_numbers<[1], [0], [0], [1], [0, 0, 1, 1], [], []>} : vector<2x64xf32>, vector<64x256xf32>, vector<2x256xf32> -> vector<2x256xf32>
    %288 = arith.addf %287, %10 : vector<2x256xf32>
    %289 = arith.negf %288 : vector<2x256xf32>
    %290 = math.exp %289 : vector<2x256xf32>
    %cst_67 = arith.constant 1.000000e+00 : f32
    %291 = vector.broadcast %cst_67 : f32 to vector<2x256xf32>
    %292 = arith.addf %291, %290 : vector<2x256xf32>
    %293 = arith.divf %291, %292 : vector<2x256xf32>
    %294 = vector.extract_strided_slice %293 {offsets = [0, 128], sizes = [2, 32], strides = [1, 1]} : vector<2x256xf32> to vector<2x32xf32>
    %295 = vector.extract_strided_slice %293 {offsets = [0, 160], sizes = [2, 32], strides = [1, 1]} : vector<2x256xf32> to vector<2x32xf32>
    %296 = vector.extract_strided_slice %293 {offsets = [0, 192], sizes = [2, 32], strides = [1, 1]} : vector<2x256xf32> to vector<2x32xf32>
    %cst_68 = arith.constant 2.000000e+00 : f32
    %297 = vector.broadcast %cst_68 : f32 to vector<2x32xf32>
    %298 = arith.mulf %297, %296 : vector<2x32xf32>
    %cst_69 = arith.constant 1.000000e+00 : f32
    %299 = vector.broadcast %cst_69 : f32 to vector<2x32xf32>
    %300 = arith.subf %298, %299 : vector<2x32xf32>
    %301 = vector.extract_strided_slice %293 {offsets = [0, 224], sizes = [2, 32], strides = [1, 1]} : vector<2x256xf32> to vector<2x32xf32>
    %302 = arith.mulf %295, %283 : vector<2x32xf32>
    %303 = arith.mulf %294, %300 : vector<2x32xf32>
    %304 = arith.addf %302, %303 : vector<2x32xf32>
    %305 = math.tanh %304 : vector<2x32xf32>
    %306 = arith.mulf %301, %305 : vector<2x32xf32>
    %307 = tpu.concatenate %75, %110, %145, %180, %215, %250, %285, %306 in 0 : vector<2x32xf32>, vector<2x32xf32>, vector<2x32xf32>, vector<2x32xf32>, vector<2x32xf32>, vector<2x32xf32>, vector<2x32xf32>, vector<2x32xf32> -> vector<16x32xf32>
    %c0_70 = arith.constant 0 : index
    %c0_71 = arith.constant 0 : index
    %308 = vector.load %arg6[%c0_70, %c0_71] : memref<32x128xf32, #tpu.memory_space<vmem>>, vector<32x128xf32>
    %cst_72 = arith.constant dense<0.000000e+00> : vector<16x128xf32>
    %309 = tpu.matmul %307, %308, %cst_72 {dimension_numbers = #tpu.dot_dimension_numbers<[1], [0], [0], [1], [0, 0, 1, 1], [], []>} : vector<16x32xf32>, vector<32x128xf32>, vector<16x128xf32> -> vector<16x128xf32>
    %c0_73 = arith.constant 0 : index
    %c0_74 = arith.constant 0 : index
    %310 = vector.load %arg7[%c0_73, %c0_74] : memref<1x128xf32, #tpu.memory_space<vmem>>, vector<1x128xf32>
    %311 = vector.shape_cast %310 : vector<1x128xf32> to vector<1x128xf32>
    %312 = vector.broadcast %311 : vector<1x128xf32> to vector<16x128xf32>
    %313 = arith.addf %309, %312 : vector<16x128xf32>
    %c0_75 = arith.constant 0 : index
    %c0_76 = arith.constant 0 : index
    %314 = vector.load %arg8[%c0_75, %c0_76] : memref<16x128xf32, #tpu.memory_space<vmem>>, vector<16x128xf32>
    tpu.vector_store %arg8[%c0_75, %c0_76], %313 {strides = array<i32>} : memref<16x128xf32, #tpu.memory_space<vmem>>, vector<16x128xf32>,
    %c0_77 = arith.constant 0 : index
    %c0_78 = arith.constant 0 : index
    %c0_79 = arith.constant 0 : index
    %315 = vector.load %arg9[%c0_77, %c0_78, %c0_79] : memref<2x2x32xf32, #tpu.memory_space<vmem>>, vector<1x2x32xf32>
    %316 = vector.shape_cast %315 : vector<1x2x32xf32> to vector<2x32xf32>
    %317 = vector.shape_cast %272 : vector<2x32xf32> to vector<1x2x32xf32>
    tpu.vector_store %arg9[%c0_77, %c0_78, %c0_79], %317 {strides = array<i32>} : memref<2x2x32xf32, #tpu.memory_space<vmem>>, vector<1x2x32xf32>,
    %c0_80 = arith.constant 0 : index
    %c0_81 = arith.constant 0 : index
    %c0_82 = arith.constant 0 : index
    %318 = vector.load %arg10[%c0_80, %c0_81, %c0_82] : memref<2x2x32xf32, #tpu.memory_space<vmem>>, vector<1x2x32xf32>
    %319 = vector.shape_cast %318 : vector<1x2x32xf32> to vector<2x32xf32>
    %320 = vector.shape_cast %270 : vector<2x32xf32> to vector<1x2x32xf32>
    tpu.vector_store %arg10[%c0_80, %c0_81, %c0_82], %320 {strides = array<i32>} : memref<2x2x32xf32, #tpu.memory_space<vmem>>, vector<1x2x32xf32>,
    %c1_83 = arith.constant 1 : index
    %c0_84 = arith.constant 0 : index
    %c0_85 = arith.constant 0 : index
    %321 = vector.load %arg9[%c1_83, %c0_84, %c0_85] : memref<2x2x32xf32, #tpu.memory_space<vmem>>, vector<1x2x32xf32>
    %322 = vector.shape_cast %321 : vector<1x2x32xf32> to vector<2x32xf32>
    %323 = vector.shape_cast %306 : vector<2x32xf32> to vector<1x2x32xf32>
    tpu.vector_store %arg9[%c1_83, %c0_84, %c0_85], %323 {strides = array<i32>} : memref<2x2x32xf32, #tpu.memory_space<vmem>>, vector<1x2x32xf32>,
    %c1_86 = arith.constant 1 : index
    %c0_87 = arith.constant 0 : index
    %c0_88 = arith.constant 0 : index
    %324 = vector.load %arg10[%c1_86, %c0_87, %c0_88] : memref<2x2x32xf32, #tpu.memory_space<vmem>>, vector<1x2x32xf32>
    %325 = vector.shape_cast %324 : vector<1x2x32xf32> to vector<2x32xf32>
    %326 = vector.shape_cast %304 : vector<2x32xf32> to vector<1x2x32xf32>
    tpu.vector_store %arg10[%c1_86, %c0_87, %c0_88], %326 {strides = array<i32>} : memref<2x2x32xf32, #tpu.memory_space<vmem>>, vector<1x2x32xf32>,
    return
  }
}

</mosaic_0001>

<llo_original>
// kernel: mul.17
$region0: #{mul.17}
  #allocation0 [shape = 's32[1]{0}', space=sflag, size = 0x4, scoped, tag = 'scoped memory for mul.17']
  %s0 = inlined_call_operand.vmem [shape: f32[1,256], index: 0, kind: input, shape index: {}]
  %s1 = inlined_call_operand.vmem [shape: f32[1,256], index: 1, kind: input, shape index: {}]
  %s2 = inlined_call_operand.vmem [shape: f32[1,256], index: 2, kind: output, shape index: {}]
  %v3 = vld [vmem:[%s0] sm:$0x1]
  %v4 = vld [vmem:[%s1] sm:$0x1]
  %5 = xla_tuple %v3, %v4
  %6 = xla_tuple %5
  %v7 = vmul.f32 %v3, %v4
  %8 = xla_tuple %v7
  %9 = vst [vmem:[%s2] sm:$0x1] %v7
  %s10 = scalar_lea.vmem %s0, 1
  %v11 = vld [vmem:[%s10] sm:$0x1]
  %s12 = scalar_lea.vmem %s1, 1
  %v13 = vld [vmem:[%s12] sm:$0x1]
  %14 = xla_tuple %v11, %v13
  %15 = xla_tuple %14
  %v16 = vmul.f32 %v11, %v13
  %17 = xla_tuple %v16
  %s18 = scalar_lea.vmem %s2, 1
  %19 = vst [vmem:[%s18] sm:$0x1] %v16

// kernel: tile.6
$region0: #{tile.6}
  #allocation0 [shape = 's32[1]{0}', space=sflag, size = 0x4, scoped, tag = 'scoped memory for tile.6']
  %s0 = inlined_call_operand.vmem [shape: f32[128], index: 0, kind: input, shape index: {}]
  %s1 = inlined_call_operand.vmem [shape: f32[2,128], index: 1, kind: output, shape index: {}]
  // Predicated region
  $region2: #{tile.6} parent=0 // pred_check
    _
  $region3: #{tile.6} parent=0 // pred_check_branch
    %3 = sbr.rel (0) target = $region5
  $region4: #{tile.6} parent=0 // pred_region
    _
  $region5: #{tile.6} parent=0 // pred_fallthru
    _
  %v4 = vld [vmem:[%s0] ss:$0 sm:$0xff]
  %5 = vst [vmem:[%s1] sm:$0x3] %v4

// kernel: decoder_forward.1
$region0: #{decoder_forward.1}
  #allocation0 [shape = 'u32[]', space=smem, size = 0x4, offset = 0x4, fixed_abs, tag = 'smem constant byte address 0x4 - core index']
  #allocation1 [shape = 'u32[144,128]{1,0:T(1,128)}', space=vmem, size = 0x12000, scoped, tag = 'internal scratch']
  %s0 = inlined_call_operand.vmem [shape: f32[16,16], index: 0, kind: input, shape index: {}]
  %s1 = inlined_call_operand.vmem [shape: f32[2,2,32], index: 1, kind: input, shape index: {}]
  %s2 = inlined_call_operand.vmem [shape: f32[2,2,32], index: 2, kind: input, shape index: {}]
  %s3 = inlined_call_operand.vmem [shape: f32[16,256], index: 3, kind: input, shape index: {}]
  %s4 = inlined_call_operand.vmem [shape: f32[1,256], index: 4, kind: input, shape index: {}]
  %s5 = inlined_call_operand.vmem [shape: f32[64,256], index: 5, kind: input, shape index: {}]
  %s6 = inlined_call_operand.vmem [shape: f32[32,128], index: 6, kind: input, shape index: {}]
  %s7 = inlined_call_operand.vmem [shape: f32[1,128], index: 7, kind: input, shape index: {}]
  %s8 = inlined_call_operand.vmem [shape: f32[16,128], index: 8, kind: output, shape index: {0}]
  %s9 = inlined_call_operand.hbm [shape: f32[2,2,32], index: 9, kind: output, shape index: {1}]
  %s10 = inlined_call_operand.hbm [shape: f32[2,2,32], index: 10, kind: output, shape index: {2}]
  %11 = xla_tuple %s8, %s9, %s10
  %s12 = sld [smem:[#allocation0]]
  $region58: #{decoder_forward.1} parent=0
    _
  %s14 = ssub.s32 1, %s12
  %s15 = scalar_select 0, %s14, %s12
  $region1: #{decoder_forward.1} parent=0
    #allocation2 [shape = 'u8[2048]{0}', space=vmem, size = 0x800, scoped, tag = 'output window, operand 1, single buffered']
    #allocation3 [shape = 's32[1]{0}', space=sflag, size = 0x4, scoped, tag = 'scoped memory for decoder_forward.1']
    #allocation4 [shape = 'u8[2048]{0}', space=vmem, size = 0x800, scoped, tag = 'output window, operand 2, single buffered']
    #allocation5 [shape = 's32[1]{0}', space=sflag, size = 0x4, scoped, tag = 'scoped memory for decoder_forward.1']
    %16 = vsyncpa [#allocation3], 0
    %17 = vsyncpa [#allocation5], 0
    // Predicated region
    $region2: #{decoder_forward.1} parent=1 // pred_check
      _
    $region3: #{decoder_forward.1} parent=1 // pred_check_branch
      %19 = sbr.rel (0) target = $region5
    $region4: #{decoder_forward.1} parent=1 // pred_region
      _
    $region5: #{decoder_forward.1} parent=1 // pred_fallthru
      _
    // Predicated region
    $region6: #{decoder_forward.1} parent=1 // pred_check
      _
    $region7: #{decoder_forward.1} parent=1 // pred_check_branch
      %21 = sbr.rel (0) target = $region9
    $region8: #{decoder_forward.1} parent=1 // pred_region
      _
    $region9: #{decoder_forward.1} parent=1 // pred_fallthru
      _
    // Predicated region
    $region10: #{decoder_forward.1} parent=1 // pred_check
      _
    $region11: #{decoder_forward.1} parent=1 // pred_check_branch
      %23 = sbr.rel (0) target = $region13
    $region12: #{decoder_forward.1} parent=1 // pred_region
      _
    $region13: #{decoder_forward.1} parent=1 // pred_fallthru
      _
    // Predicated region
    $region14: #{decoder_forward.1} parent=1 // pred_check
      _
    $region15: #{decoder_forward.1} parent=1 // pred_check_branch
      %25 = sbr.rel (0) target = $region17
    $region16: #{decoder_forward.1} parent=1 // pred_region
      _
    $region17: #{decoder_forward.1} parent=1 // pred_fallthru
      _
    // Predicated region
    $region18: #{decoder_forward.1} parent=1 // pred_check
      _
    $region19: #{decoder_forward.1} parent=1 // pred_check_branch
      %27 = sbr.rel (0) target = $region21
    $region20: #{decoder_forward.1} parent=1 // pred_region
      _
    $region21: #{decoder_forward.1} parent=1 // pred_fallthru
      _
    // Predicated region
    $region22: #{decoder_forward.1} parent=1 // pred_check
      _
    $region23: #{decoder_forward.1} parent=1 // pred_check_branch
      %29 = sbr.rel (0) target = $region25
    $region24: #{decoder_forward.1} parent=1 // pred_region
      _
    $region25: #{decoder_forward.1} parent=1 // pred_fallthru
      _
    // Predicated region
    $region26: #{decoder_forward.1} parent=1 // pred_check
      _
    $region27: #{decoder_forward.1} parent=1 // pred_check_branch
      %31 = sbr.rel (0) target = $region29
    $region28: #{decoder_forward.1} parent=1 // pred_region
      _
    $region29: #{decoder_forward.1} parent=1 // pred_fallthru
      _
    // Predicated region
    $region30: #{decoder_forward.1} parent=1 // pred_check
      _
    $region31: #{decoder_forward.1} parent=1 // pred_check_branch
      %33 = sbr.rel (0) target = $region33
    $region32: #{decoder_forward.1} parent=1 // pred_region
      _
    $region33: #{decoder_forward.1} parent=1 // pred_fallthru
      _
    %v34 = vld [vmem:[%s0] sm:$0xff]
    %v35 = vld [vmem:[%s0 + $0x8] sm:$0xff]
    %v36 = vld [vmem:[%s3] sm:$0xff]
    %v37 = vld [vmem:[%s3 + $0x8] sm:$0xff]
    %v38 = vld [vmem:[%s3 + $0x10] sm:$0xff]
    %v39 = vld [vmem:[%s3 + $0x18] sm:$0xff]
    %v40 = vld [vmem:[%s4] sm:$0x3]
    %v42 = vlaneseq
    %v43 = vshrl.u32 %v42, 7
    %v44 = vsub.s32 0, %v43
    %v45 = vrot.slane %v40, %v44
    %v46 = vlaneseq
    %v47 = vshrl.u32 %v46, 7
    %v48 = vsub.s32 1, %v47
    %v49 = vrot.slane %v40, %v48
    %vm52 = vcmask 130048
    %v54 = vsel %vm52, %v34, 0
    %v57 = vsel %vm52, %v35, 0
    %59 = vmatprep.subr.mxu0 %v37
    %60 = vmatpush1.msra.mxu0 %v36
    %61 = vmatprep.subr.mxu0 %v39
    %62 = vmatpush1.msra.mxu0 %v38
    %63 = vmatprep.subr.mxu0 0.0
    %64 = vmatpush1.msra.mxu0 0.0
    %65 = vmatprep.subr.mxu0 0.0
    %66 = vmatpush1.msra.mxu0 0.0
    %67 = vmatprep.subr.mxu0 0.0
    %68 = vmatpush1.msra.mxu0 0.0
    %69 = vmatprep.subr.mxu0 0.0
    %70 = vmatpush1.msra.mxu0 0.0
    %71 = vmatprep.subr.mxu0 0.0
    %72 = vmatpush1.msra.mxu0 0.0
    %73 = vmatprep.subr.mxu0 0.0
    %74 = vmatpush1.msra.mxu0 0.0
    %75 = vmatprep.subr.mxu0 0.0
    %76 = vmatpush1.msra.mxu0 0.0
    %77 = vmatprep.subr.mxu0 0.0
    %78 = vmatpush1.msra.mxu0 0.0
    %79 = vmatprep.subr.mxu0 0.0
    %80 = vmatpush1.msra.mxu0 0.0
    %81 = vmatprep.subr.mxu0 0.0
    %82 = vmatpush1.msra.mxu0 0.0
    %83 = vmatprep.subr.mxu0 0.0
    %84 = vmatpush1.msra.mxu0 0.0
    %85 = vmatprep.subr.mxu0 0.0
    %86 = vmatpush1.msra.mxu0 0.0
    %87 = vmatprep.subr.mxu0 0.0
    %88 = vmatpush1.msra.mxu0 0.0
    %89 = vmatprep.subr.mxu0 0.0
    %90 = vmatpush1.msra.mxu0 0.0
    %91 = vmatprep.subr.mxu0 0.0
    %92 = vmatpush1.msra.mxu0 0.0
    %93 = vmatprep.subr.mxu0 0.0
    %94 = vmatpush1.msra.mxu0 0.0
    %95 = vmatprep.subr.mxu0 0.0
    %96 = vmatpush1.msra.mxu0 0.0
    %97 = vmatprep.subr.mxu0 0.0
    %98 = vmatpush1.msra.mxu0 0.0
    %99 = vmatprep.subr.mxu0 0.0
    %100 = vmatpush1.msra.mxu0 0.0
    %101 = vmatprep.subr.mxu0 0.0
    %102 = vmatpush1.msra.mxu0 0.0
    %103 = vmatprep.subr.mxu0 0.0
    %104 = vmatpush1.msra.mxu0 0.0
    %105 = vmatprep.subr.mxu0 0.0
    %106 = vmatpush1.msra.mxu0 0.0
    %107 = vmatprep.subr.mxu0 0.0
    %108 = vmatpush1.msra.mxu0 0.0
    %109 = vmatprep.subr.mxu0 0.0
    %110 = vmatpush1.msra.mxu0 0.0
    %111 = vmatprep.subr.mxu0 0.0
    %112 = vmatpush1.msra.mxu0 0.0
    %113 = vmatprep.subr.mxu0 0.0
    %114 = vmatpush1.msra.mxu0 0.0
    %115 = vmatprep.subr.mxu0 0.0
    %116 = vmatpush1.msra.mxu0 0.0
    %117 = vmatprep.subr.mxu0 0.0
    %118 = vmatpush1.msra.mxu0 0.0
    %119 = vmatprep.subr.mxu0 0.0
    %120 = vmatpush1.msra.mxu0 0.0
    %121 = vmatprep.subr.mxu0 0.0
    %122 = vmatpush1.msra.mxu0 0.0
    %123 = vmatprep.mubr.f32.mxu0 0.0
    %124 = vmatmul.mubr.f32.gmra.mrb[0].mxu0 %v54
    %v125 = vpop.f32.mrb[0].mxu0
    %v126 = vadd.f32 %v45, %v125
    %v127 = vpop.f32.mrb[0].mxu0
    %v128 = vadd.f32 %v49, %v127
    %129 = vmatprep.mubr.f32.mxu0 0.0
    %130 = vmatmul.mubr.f32.gmra.mrb[0].mxu0 %v57
    %v131 = vpop.f32.mrb[0].mxu0
    %v132 = vadd.f32 %v45, %v131
    %v133 = vpop.f32.mrb[0].mxu0
    %v134 = vadd.f32 %v49, %v133
    %135 = vdwg.mxu0
    %v136 = vld [vmem:[%s5] sm:$0xff]
    %v137 = vld [vmem:[%s5 + $0x8] sm:$0xff]
    %v138 = vld [vmem:[%s5 + $0x10] sm:$0xff]
    %v139 = vld [vmem:[%s5 + $0x18] sm:$0xff]
    %v140 = vld [vmem:[%s5 + $0x20] sm:$0xff]
    %v141 = vld [vmem:[%s5 + $0x28] sm:$0xff]
    %v142 = vld [vmem:[%s5 + $0x30] sm:$0xff]
    %v143 = vld [vmem:[%s5 + $0x38] sm:$0xff]
    %v144 = vld [vmem:[%s5 + $0x40] sm:$0xff]
    %v145 = vld [vmem:[%s5 + $0x48] sm:$0xff]
    %v146 = vld [vmem:[%s5 + $0x50] sm:$0xff]
    %v147 = vld [vmem:[%s5 + $0x58] sm:$0xff]
    %v148 = vld [vmem:[%s5 + $0x60] sm:$0xff]
    %v149 = vld [vmem:[%s5 + $0x68] sm:$0xff]
    %v150 = vld [vmem:[%s5 + $0x70] sm:$0xff]
    %v151 = vld [vmem:[%s5 + $0x78] sm:$0xff]
    %v152 = vld [vmem:[%s1] sm:$0x3]
    %s153 = scalar_lea.vmem %s1, 2
    %v154 = vld [vmem:[%s153] sm:$0x3]
    %v155 = vld [vmem:[%s2] sm:$0x3]
    %s156 = scalar_lea.vmem %s2, 2
    %v157 = vld [vmem:[%s156] sm:$0x3]
    %159 = vrot.lane.b32.xlu0 %v154, 32
    %v160 = vpop.permute.xlu0 %159
    %vm162 = vcmask 261120
    %v163 = vsel %vm162, %v152, %v160
    %vm164 = vcmask 523264
    %v166 = vsel %vm164, %v163, 0
    %168 = vmatprep.subr.mxu0 %v137
    %169 = vmatpush1.msra.mxu0 %v136
    %170 = vmatprep.subr.mxu0 %v139
    %171 = vmatpush1.msra.mxu0 %v138
    %172 = vmatprep.subr.mxu0 %v141
    %173 = vmatpush1.msra.mxu0 %v140
    %174 = vmatprep.subr.mxu0 %v143
    %175 = vmatpush1.msra.mxu0 %v142
    %176 = vmatprep.subr.mxu0 %v145
    %177 = vmatpush1.msra.mxu0 %v144
    %178 = vmatprep.subr.mxu0 %v147
    %179 = vmatpush1.msra.mxu0 %v146
    %180 = vmatprep.subr.mxu0 %v149
    %181 = vmatpush1.msra.mxu0 %v148
    %182 = vmatprep.subr.mxu0 %v151
    %183 = vmatpush1.msra.mxu0 %v150
    %184 = vmatprep.subr.mxu0 0.0
    %185 = vmatpush1.msra.mxu0 0.0
    %186 = vmatprep.subr.mxu0 0.0
    %187 = vmatpush1.msra.mxu0 0.0
    %188 = vmatprep.subr.mxu0 0.0
    %189 = vmatpush1.msra.mxu0 0.0
    %190 = vmatprep.subr.mxu0 0.0
    %191 = vmatpush1.msra.mxu0 0.0
    %192 = vmatprep.subr.mxu0 0.0
    %193 = vmatpush1.msra.mxu0 0.0
    %194 = vmatprep.subr.mxu0 0.0
    %195 = vmatpush1.msra.mxu0 0.0
    %196 = vmatprep.subr.mxu0 0.0
    %197 = vmatpush1.msra.mxu0 0.0
    %198 = vmatprep.subr.mxu0 0.0
    %199 = vmatpush1.msra.mxu0 0.0
    %200 = vmatprep.subr.mxu0 0.0
    %201 = vmatpush1.msra.mxu0 0.0
    %202 = vmatprep.subr.mxu0 0.0
    %203 = vmatpush1.msra.mxu0 0.0
    %204 = vmatprep.subr.mxu0 0.0
    %205 = vmatpush1.msra.mxu0 0.0
    %206 = vmatprep.subr.mxu0 0.0
    %207 = vmatpush1.msra.mxu0 0.0
    %208 = vmatprep.subr.mxu0 0.0
    %209 = vmatpush1.msra.mxu0 0.0
    %210 = vmatprep.subr.mxu0 0.0
    %211 = vmatpush1.msra.mxu0 0.0
    %212 = vmatprep.subr.mxu0 0.0
    %213 = vmatpush1.msra.mxu0 0.0
    %214 = vmatprep.subr.mxu0 0.0
    %215 = vmatpush1.msra.mxu0 0.0
    %216 = vmatprep.subr.mxu0 0.0
    %217 = vmatpush1.msra.mxu0 0.0
    %218 = vmatprep.subr.mxu0 0.0
    %219 = vmatpush1.msra.mxu0 0.0
    %220 = vmatprep.subr.mxu0 0.0
    %221 = vmatpush1.msra.mxu0 0.0
    %222 = vmatprep.subr.mxu0 0.0
    %223 = vmatpush1.msra.mxu0 0.0
    %224 = vmatprep.subr.mxu0 0.0
    %225 = vmatpush1.msra.mxu0 0.0
    %226 = vmatprep.subr.mxu0 0.0
    %227 = vmatpush1.msra.mxu0 0.0
    %228 = vmatprep.subr.mxu0 0.0
    %229 = vmatpush1.msra.mxu0 0.0
    %230 = vmatprep.subr.mxu0 0.0
    %231 = vmatpush1.msra.mxu0 0.0
    %232 = vmatprep.mubr.f32.mxu0 0.0
    %233 = vmatmul.mubr.f32.gmra.mrb[0].mxu0 %v166
    %v234 = vpop.f32.mrb[0].mxu0
    %v235 = vadd.f32 %v126, %v234
    %v236 = vpop.f32.mrb[0].mxu0
    %237 = vdwg.mxu0
    %v238 = vxor.u32 %v235, 2147483648
    %v239 = vmul.f32 %v238, 1.442695
    %v240 = vpow.pop %v239
    %v241 = vadd.f32 %v240, 1.0
    %v242 = vrcp.pop %v241
    %v243 = vmul.f32 1.0, %v242
    %v244 = vmul.f32 %v243, 2.0
    %v245 = vsub.f32 %v244, 1.0
    %247 = vrot.lane.b32.xlu0 %v155, 32
    %v248 = vpop.permute.xlu0 %247
    %v250 = vmul.f32 %v243, %v248
    %252 = vrot.lane.b32.xlu0 %v245, 64
    %v253 = vpop.permute.xlu0 %252
    %v255 = vmul.f32 %v243, %v253
    %257 = vrot.lane.b32.xlu0 %v255, 32
    %v258 = vpop.permute.xlu0 %257
    %v260 = vadd.f32 %v250, %v258
    %v261 = vtanh.pop %v260
    %263 = vrot.lane.b32.xlu0 %v261, 64
    %v264 = vpop.permute.xlu0 %263
    %v266 = vmul.f32 %v243, %v264
    %268 = vrot.lane.b32.xlu0 %v266, 32
    %v269 = vpop.permute.xlu0 %268
    %v271 = vsel %vm162, %v269, %v160
    %v274 = vrot.slane %v126, 2
    %v275 = vrot.slane %v128, 2
    %v279 = vsel %vm164, %v271, 0
    %281 = vmatprep.subr.mxu0 %v137
    %282 = vmatpush1.msra.mxu0 %v136
    %283 = vmatprep.subr.mxu0 %v139
    %284 = vmatpush1.msra.mxu0 %v138
    %285 = vmatprep.subr.mxu0 %v141
    %286 = vmatpush1.msra.mxu0 %v140
    %287 = vmatprep.subr.mxu0 %v143
    %288 = vmatpush1.msra.mxu0 %v142
    %289 = vmatprep.subr.mxu0 %v145
    %290 = vmatpush1.msra.mxu0 %v144
    %291 = vmatprep.subr.mxu0 %v147
    %292 = vmatpush1.msra.mxu0 %v146
    %293 = vmatprep.subr.mxu0 %v149
    %294 = vmatpush1.msra.mxu0 %v148
    %295 = vmatprep.subr.mxu0 %v151
    %296 = vmatpush1.msra.mxu0 %v150
    %297 = vmatprep.subr.mxu0 0.0
    %298 = vmatpush1.msra.mxu0 0.0
    %299 = vmatprep.subr.mxu0 0.0
    %300 = vmatpush1.msra.mxu0 0.0
    %301 = vmatprep.subr.mxu0 0.0
    %302 = vmatpush1.msra.mxu0 0.0
    %303 = vmatprep.subr.mxu0 0.0
    %304 = vmatpush1.msra.mxu0 0.0
    %305 = vmatprep.subr.mxu0 0.0
    %306 = vmatpush1.msra.mxu0 0.0
    %307 = vmatprep.subr.mxu0 0.0
    %308 = vmatpush1.msra.mxu0 0.0
    %309 = vmatprep.subr.mxu0 0.0
    %310 = vmatpush1.msra.mxu0 0.0
    %311 = vmatprep.subr.mxu0 0.0
    %312 = vmatpush1.msra.mxu0 0.0
    %313 = vmatprep.subr.mxu0 0.0
    %314 = vmatpush1.msra.mxu0 0.0
    %315 = vmatprep.subr.mxu0 0.0
    %316 = vmatpush1.msra.mxu0 0.0
    %317 = vmatprep.subr.mxu0 0.0
    %318 = vmatpush1.msra.mxu0 0.0
    %319 = vmatprep.subr.mxu0 0.0
    %320 = vmatpush1.msra.mxu0 0.0
    %321 = vmatprep.subr.mxu0 0.0
    %322 = vmatpush1.msra.mxu0 0.0
    %323 = vmatprep.subr.mxu0 0.0
    %324 = vmatpush1.msra.mxu0 0.0
    %325 = vmatprep.subr.mxu0 0.0
    %326 = vmatpush1.msra.mxu0 0.0
    %327 = vmatprep.subr.mxu0 0.0
    %328 = vmatpush1.msra.mxu0 0.0
    %329 = vmatprep.subr.mxu0 0.0
    %330 = vmatpush1.msra.mxu0 0.0
    %331 = vmatprep.subr.mxu0 0.0
    %332 = vmatpush1.msra.mxu0 0.0
    %333 = vmatprep.subr.mxu0 0.0
    %334 = vmatpush1.msra.mxu0 0.0
    %335 = vmatprep.subr.mxu0 0.0
    %336 = vmatpush1.msra.mxu0 0.0
    %337 = vmatprep.subr.mxu0 0.0
    %338 = vmatpush1.msra.mxu0 0.0
    %339 = vmatprep.subr.mxu0 0.0
    %340 = vmatpush1.msra.mxu0 0.0
    %341 = vmatprep.subr.mxu0 0.0
    %342 = vmatpush1.msra.mxu0 0.0
    %343 = vmatprep.subr.mxu0 0.0
    %344 = vmatpush1.msra.mxu0 0.0
    %345 = vmatprep.mubr.f32.mxu0 0.0
    %346 = vmatmul.mubr.f32.gmra.mrb[0].mxu0 %v279
    %v347 = vpop.f32.mrb[0].mxu0
    %v348 = vadd.f32 %v274, %v347
    %v349 = vpop.f32.mrb[0].mxu0
    %v350 = vadd.f32 %v275, %v349
    %351 = vdwg.mxu0
    %v352 = vxor.u32 %v348, 2147483648
    %v353 = vxor.u32 %v350, 2147483648
    %v354 = vmul.f32 %v352, 1.442695
    %v355 = vpow.pop %v354
    %v356 = vmul.f32 %v353, 1.442695
    %v357 = vpow.pop %v356
    %v358 = vadd.f32 %v355, 1.0
    %v359 = vadd.f32 %v357, 1.0
    %v360 = vrcp.pop %v358
    %v361 = vmul.f32 1.0, %v360
    %v362 = vrcp.pop %v359
    %v363 = vmul.f32 1.0, %v362
    %v364 = vmul.f32 %v361, 2.0
    %v365 = vsub.f32 %v364, 1.0
    %v366 = vmul.f32 %v361, %v260
    %368 = vrot.lane.b32.xlu0 %v365, 64
    %v369 = vpop.permute.xlu0 %368
    %v371 = vmul.f32 %v361, %v369
    %373 = vrot.lane.b32.xlu0 %v371, 32
    %v374 = vpop.permute.xlu0 %373
    %v376 = vadd.f32 %v366, %v374
    %v377 = vtanh.pop %v376
    %379 = vrot.lane.b32.xlu0 %v377, 64
    %v380 = vpop.permute.xlu0 %379
    %v382 = vmul.f32 %v361, %v380
    %v383 = vmul.f32 %v363, 2.0
    %v384 = vsub.f32 %v383, 1.0
    %386 = vrot.lane.b32.xlu0 %v157, 32
    %v387 = vpop.permute.xlu0 %386
    %v389 = vmul.f32 %v363, %v387
    %391 = vrot.lane.b32.xlu0 %v384, 64
    %v392 = vpop.permute.xlu0 %391
    %v394 = vmul.f32 %v363, %v392
    %396 = vrot.lane.b32.xlu0 %v394, 32
    %v397 = vpop.permute.xlu0 %396
    %v399 = vadd.f32 %v389, %v397
    %v400 = vtanh.pop %v399
    %402 = vrot.lane.b32.xlu0 %v400, 64
    %v403 = vpop.permute.xlu0 %402
    %v405 = vmul.f32 %v363, %v403
    %407 = vrot.lane.b32.xlu0 %v382, 32
    %v408 = vpop.permute.xlu0 %407
    %411 = vrot.lane.b32.xlu0 %v405, 64
    %v412 = vpop.permute.xlu0 %411
    %v414 = vsel %vm162, %v408, %v412
    %v415 = vrot.slane %v126, 4
    %v416 = vrot.slane %v128, 4
    %v420 = vsel %vm164, %v414, 0
    %422 = vmatprep.subr.mxu0 %v137
    %423 = vmatpush1.msra.mxu0 %v136
    %424 = vmatprep.subr.mxu0 %v139
    %425 = vmatpush1.msra.mxu0 %v138
    %426 = vmatprep.subr.mxu0 %v141
    %427 = vmatpush1.msra.mxu0 %v140
    %428 = vmatprep.subr.mxu0 %v143
    %429 = vmatpush1.msra.mxu0 %v142
    %430 = vmatprep.subr.mxu0 %v145
    %431 = vmatpush1.msra.mxu0 %v144
    %432 = vmatprep.subr.mxu0 %v147
    %433 = vmatpush1.msra.mxu0 %v146
    %434 = vmatprep.subr.mxu0 %v149
    %435 = vmatpush1.msra.mxu0 %v148
    %436 = vmatprep.subr.mxu0 %v151
    %437 = vmatpush1.msra.mxu0 %v150
    %438 = vmatprep.subr.mxu0 0.0
    %439 = vmatpush1.msra.mxu0 0.0
    %440 = vmatprep.subr.mxu0 0.0
    %441 = vmatpush1.msra.mxu0 0.0
    %442 = vmatprep.subr.mxu0 0.0
    %443 = vmatpush1.msra.mxu0 0.0
    %444 = vmatprep.subr.mxu0 0.0
    %445 = vmatpush1.msra.mxu0 0.0
    %446 = vmatprep.subr.mxu0 0.0
    %447 = vmatpush1.msra.mxu0 0.0
    %448 = vmatprep.subr.mxu0 0.0
    %449 = vmatpush1.msra.mxu0 0.0
    %450 = vmatprep.subr.mxu0 0.0
    %451 = vmatpush1.msra.mxu0 0.0
    %452 = vmatprep.subr.mxu0 0.0
    %453 = vmatpush1.msra.mxu0 0.0
    %454 = vmatprep.subr.mxu0 0.0
    %455 = vmatpush1.msra.mxu0 0.0
    %456 = vmatprep.subr.mxu0 0.0
    %457 = vmatpush1.msra.mxu0 0.0
    %458 = vmatprep.subr.mxu0 0.0
    %459 = vmatpush1.msra.mxu0 0.0
    %460 = vmatprep.subr.mxu0 0.0
    %461 = vmatpush1.msra.mxu0 0.0
    %462 = vmatprep.subr.mxu0 0.0
    %463 = vmatpush1.msra.mxu0 0.0
    %464 = vmatprep.subr.mxu0 0.0
    %465 = vmatpush1.msra.mxu0 0.0
    %466 = vmatprep.subr.mxu0 0.0
    %467 = vmatpush1.msra.mxu0 0.0
    %468 = vmatprep.subr.mxu0 0.0
    %469 = vmatpush1.msra.mxu0 0.0
    %470 = vmatprep.subr.mxu0 0.0
    %471 = vmatpush1.msra.mxu0 0.0
    %472 = vmatprep.subr.mxu0 0.0
    %473 = vmatpush1.msra.mxu0 0.0
    %474 = vmatprep.subr.mxu0 0.0
    %475 = vmatpush1.msra.mxu0 0.0
    %476 = vmatprep.subr.mxu0 0.0
    %477 = vmatpush1.msra.mxu0 0.0
    %478 = vmatprep.subr.mxu0 0.0
    %479 = vmatpush1.msra.mxu0 0.0
    %480 = vmatprep.subr.mxu0 0.0
    %481 = vmatpush1.msra.mxu0 0.0
    %482 = vmatprep.subr.mxu0 0.0
    %483 = vmatpush1.msra.mxu0 0.0
    %484 = vmatprep.subr.mxu0 0.0
    %485 = vmatpush1.msra.mxu0 0.0
    %486 = vmatprep.mubr.f32.mxu0 0.0
    %487 = vmatmul.mubr.f32.gmra.mrb[0].mxu0 %v420
    %v488 = vpop.f32.mrb[0].mxu0
    %v489 = vadd.f32 %v415, %v488
    %v490 = vpop.f32.mrb[0].mxu0
    %v491 = vadd.f32 %v416, %v490
    %492 = vdwg.mxu0
    %v493 = vxor.u32 %v489, 2147483648
    %v494 = vxor.u32 %v491, 2147483648
    %v495 = vmul.f32 %v493, 1.442695
    %v496 = vpow.pop %v495
    %v497 = vmul.f32 %v494, 1.442695
    %v498 = vpow.pop %v497
    %v499 = vadd.f32 %v496, 1.0
    %v500 = vadd.f32 %v498, 1.0
    %v501 = vrcp.pop %v499
    %v502 = vmul.f32 1.0, %v501
    %v503 = vrcp.pop %v500
    %v504 = vmul.f32 1.0, %v503
    %v505 = vmul.f32 %v502, 2.0
    %v506 = vsub.f32 %v505, 1.0
    %v507 = vmul.f32 %v502, %v376
    %509 = vrot.lane.b32.xlu0 %v506, 64
    %v510 = vpop.permute.xlu0 %509
    %v512 = vmul.f32 %v502, %v510
    %514 = vrot.lane.b32.xlu0 %v512, 32
    %v515 = vpop.permute.xlu0 %514
    %v517 = vadd.f32 %v507, %v515
    %v518 = vtanh.pop %v517
    %520 = vrot.lane.b32.xlu0 %v518, 64
    %v521 = vpop.permute.xlu0 %520
    %v523 = vmul.f32 %v502, %v521
    %v524 = vmul.f32 %v504, 2.0
    %v525 = vsub.f32 %v524, 1.0
    %v526 = vmul.f32 %v504, %v399
    %528 = vrot.lane.b32.xlu0 %v525, 64
    %v529 = vpop.permute.xlu0 %528
    %v531 = vmul.f32 %v504, %v529
    %533 = vrot.lane.b32.xlu0 %v531, 32
    %v534 = vpop.permute.xlu0 %533
    %v536 = vadd.f32 %v526, %v534
    %v537 = vtanh.pop %v536
    %539 = vrot.lane.b32.xlu0 %v537, 64
    %v540 = vpop.permute.xlu0 %539
    %v542 = vmul.f32 %v504, %v540
    %544 = vrot.lane.b32.xlu0 %v523, 32
    %v545 = vpop.permute.xlu0 %544
    %548 = vrot.lane.b32.xlu0 %v542, 64
    %v549 = vpop.permute.xlu0 %548
    %v551 = vsel %vm162, %v545, %v549
    %v552 = vrot.slane %v126, 6
    %v553 = vrot.slane %v128, 6
    %v557 = vsel %vm164, %v551, 0
    %559 = vmatprep.subr.mxu0 %v137
    %560 = vmatpush1.msra.mxu0 %v136
    %561 = vmatprep.subr.mxu0 %v139
    %562 = vmatpush1.msra.mxu0 %v138
    %563 = vmatprep.subr.mxu0 %v141
    %564 = vmatpush1.msra.mxu0 %v140
    %565 = vmatprep.subr.mxu0 %v143
    %566 = vmatpush1.msra.mxu0 %v142
    %567 = vmatprep.subr.mxu0 %v145
    %568 = vmatpush1.msra.mxu0 %v144
    %569 = vmatprep.subr.mxu0 %v147
    %570 = vmatpush1.msra.mxu0 %v146
    %571 = vmatprep.subr.mxu0 %v149
    %572 = vmatpush1.msra.mxu0 %v148
    %573 = vmatprep.subr.mxu0 %v151
    %574 = vmatpush1.msra.mxu0 %v150
    %575 = vmatprep.subr.mxu0 0.0
    %576 = vmatpush1.msra.mxu0 0.0
    %577 = vmatprep.subr.mxu0 0.0
    %578 = vmatpush1.msra.mxu0 0.0
    %579 = vmatprep.subr.mxu0 0.0
    %580 = vmatpush1.msra.mxu0 0.0
    %581 = vmatprep.subr.mxu0 0.0
    %582 = vmatpush1.msra.mxu0 0.0
    %583 = vmatprep.subr.mxu0 0.0
    %584 = vmatpush1.msra.mxu0 0.0
    %585 = vmatprep.subr.mxu0 0.0
    %586 = vmatpush1.msra.mxu0 0.0
    %587 = vmatprep.subr.mxu0 0.0
    %588 = vmatpush1.msra.mxu0 0.0
    %589 = vmatprep.subr.mxu0 0.0
    %590 = vmatpush1.msra.mxu0 0.0
    %591 = vmatprep.subr.mxu0 0.0
    %592 = vmatpush1.msra.mxu0 0.0
    %593 = vmatprep.subr.mxu0 0.0
    %594 = vmatpush1.msra.mxu0 0.0
    %595 = vmatprep.subr.mxu0 0.0
    %596 = vmatpush1.msra.mxu0 0.0
    %597 = vmatprep.subr.mxu0 0.0
    %598 = vmatpush1.msra.mxu0 0.0
    %599 = vmatprep.subr.mxu0 0.0
    %600 = vmatpush1.msra.mxu0 0.0
    %601 = vmatprep.subr.mxu0 0.0
    %602 = vmatpush1.msra.mxu0 0.0
    %603 = vmatprep.subr.mxu0 0.0
    %604 = vmatpush1.msra.mxu0 0.0
    %605 = vmatprep.subr.mxu0 0.0
    %606 = vmatpush1.msra.mxu0 0.0
    %607 = vmatprep.subr.mxu0 0.0
    %608 = vmatpush1.msra.mxu0 0.0
    %609 = vmatprep.subr.mxu0 0.0
    %610 = vmatpush1.msra.mxu0 0.0
    %611 = vmatprep.subr.mxu0 0.0
    %612 = vmatpush1.msra.mxu0 0.0
    %613 = vmatprep.subr.mxu0 0.0
    %614 = vmatpush1.msra.mxu0 0.0
    %615 = vmatprep.subr.mxu0 0.0
    %616 = vmatpush1.msra.mxu0 0.0
    %617 = vmatprep.subr.mxu0 0.0
    %618 = vmatpush1.msra.mxu0 0.0
    %619 = vmatprep.subr.mxu0 0.0
    %620 = vmatpush1.msra.mxu0 0.0
    %621 = vmatprep.subr.mxu0 0.0
    %622 = vmatpush1.msra.mxu0 0.0
    %623 = vmatprep.mubr.f32.mxu0 0.0
    %624 = vmatmul.mubr.f32.gmra.mrb[0].mxu0 %v557
    %v625 = vpop.f32.mrb[0].mxu0
    %v626 = vadd.f32 %v552, %v625
    %v627 = vpop.f32.mrb[0].mxu0
    %v628 = vadd.f32 %v553, %v627
    %629 = vdwg.mxu0
    %v630 = vxor.u32 %v626, 2147483648
    %v631 = vxor.u32 %v628, 2147483648
    %v632 = vmul.f32 %v630, 1.442695
    %v633 = vpow.pop %v632
    %v634 = vmul.f32 %v631, 1.442695
    %v635 = vpow.pop %v634
    %v636 = vadd.f32 %v633, 1.0
    %v637 = vadd.f32 %v635, 1.0
    %v638 = vrcp.pop %v636
    %v639 = vmul.f32 1.0, %v638
    %v640 = vrcp.pop %v637
    %v641 = vmul.f32 1.0, %v640
    %v642 = vmul.f32 %v639, 2.0
    %v643 = vsub.f32 %v642, 1.0
    %v644 = vmul.f32 %v639, %v517
    %646 = vrot.lane.b32.xlu0 %v643, 64
    %v647 = vpop.permute.xlu0 %646
    %v649 = vmul.f32 %v639, %v647
    %651 = vrot.lane.b32.xlu0 %v649, 32
    %v652 = vpop.permute.xlu0 %651
    %v654 = vadd.f32 %v644, %v652
    %v655 = vtanh.pop %v654
    %657 = vrot.lane.b32.xlu0 %v655, 64
    %v658 = vpop.permute.xlu0 %657
    %v660 = vmul.f32 %v639, %v658
    %v661 = vmul.f32 %v641, 2.0
    %v662 = vsub.f32 %v661, 1.0
    %v663 = vmul.f32 %v641, %v536
    %665 = vrot.lane.b32.xlu0 %v662, 64
    %v666 = vpop.permute.xlu0 %665
    %v668 = vmul.f32 %v641, %v666
    %670 = vrot.lane.b32.xlu0 %v668, 32
    %v671 = vpop.permute.xlu0 %670
    %v673 = vadd.f32 %v663, %v671
    %v674 = vtanh.pop %v673
    %676 = vrot.lane.b32.xlu0 %v674, 64
    %v677 = vpop.permute.xlu0 %676
    %v679 = vmul.f32 %v641, %v677
    %681 = vrot.lane.b32.xlu0 %v660, 32
    %v682 = vpop.permute.xlu0 %681
    %685 = vrot.lane.b32.xlu0 %v679, 64
    %v686 = vpop.permute.xlu0 %685
    %v688 = vsel %vm162, %v682, %v686
    %v690 = vsel %vm164, %v688, 0
    %692 = vmatprep.subr.mxu0 %v137
    %693 = vmatpush1.msra.mxu0 %v136
    %694 = vmatprep.subr.mxu0 %v139
    %695 = vmatpush1.msra.mxu0 %v138
    %696 = vmatprep.subr.mxu0 %v141
    %697 = vmatpush1.msra.mxu0 %v140
    %698 = vmatprep.subr.mxu0 %v143
    %699 = vmatpush1.msra.mxu0 %v142
    %700 = vmatprep.subr.mxu0 %v145
    %701 = vmatpush1.msra.mxu0 %v144
    %702 = vmatprep.subr.mxu0 %v147
    %703 = vmatpush1.msra.mxu0 %v146
    %704 = vmatprep.subr.mxu0 %v149
    %705 = vmatpush1.msra.mxu0 %v148
    %706 = vmatprep.subr.mxu0 %v151
    %707 = vmatpush1.msra.mxu0 %v150
    %708 = vmatprep.subr.mxu0 0.0
    %709 = vmatpush1.msra.mxu0 0.0
    %710 = vmatprep.subr.mxu0 0.0
    %711 = vmatpush1.msra.mxu0 0.0
    %712 = vmatprep.subr.mxu0 0.0
    %713 = vmatpush1.msra.mxu0 0.0
    %714 = vmatprep.subr.mxu0 0.0
    %715 = vmatpush1.msra.mxu0 0.0
    %716 = vmatprep.subr.mxu0 0.0
    %717 = vmatpush1.msra.mxu0 0.0
    %718 = vmatprep.subr.mxu0 0.0
    %719 = vmatpush1.msra.mxu0 0.0
    %720 = vmatprep.subr.mxu0 0.0
    %721 = vmatpush1.msra.mxu0 0.0
    %722 = vmatprep.subr.mxu0 0.0
    %723 = vmatpush1.msra.mxu0 0.0
    %724 = vmatprep.subr.mxu0 0.0
    %725 = vmatpush1.msra.mxu0 0.0
    %726 = vmatprep.subr.mxu0 0.0
    %727 = vmatpush1.msra.mxu0 0.0
    %728 = vmatprep.subr.mxu0 0.0
    %729 = vmatpush1.msra.mxu0 0.0
    %730 = vmatprep.subr.mxu0 0.0
    %731 = vmatpush1.msra.mxu0 0.0
    %732 = vmatprep.subr.mxu0 0.0
    %733 = vmatpush1.msra.mxu0 0.0
    %734 = vmatprep.subr.mxu0 0.0
    %735 = vmatpush1.msra.mxu0 0.0
    %736 = vmatprep.subr.mxu0 0.0
    %737 = vmatpush1.msra.mxu0 0.0
    %738 = vmatprep.subr.mxu0 0.0
    %739 = vmatpush1.msra.mxu0 0.0
    %740 = vmatprep.subr.mxu0 0.0
    %741 = vmatpush1.msra.mxu0 0.0
    %742 = vmatprep.subr.mxu0 0.0
    %743 = vmatpush1.msra.mxu0 0.0
    %744 = vmatprep.subr.mxu0 0.0
    %745 = vmatpush1.msra.mxu0 0.0
    %746 = vmatprep.subr.mxu0 0.0
    %747 = vmatpush1.msra.mxu0 0.0
    %748 = vmatprep.subr.mxu0 0.0
    %749 = vmatpush1.msra.mxu0 0.0
    %750 = vmatprep.subr.mxu0 0.0
    %751 = vmatpush1.msra.mxu0 0.0
    %752 = vmatprep.subr.mxu0 0.0
    %753 = vmatpush1.msra.mxu0 0.0
    %754 = vmatprep.subr.mxu0 0.0
    %755 = vmatpush1.msra.mxu0 0.0
    %756 = vmatprep.mubr.f32.mxu0 0.0
    %757 = vmatmul.mubr.f32.gmra.mrb[0].mxu0 %v690
    %v758 = vpop.f32.mrb[0].mxu0
    %v759 = vadd.f32 %v132, %v758
    %v760 = vpop.f32.mrb[0].mxu0
    %v761 = vadd.f32 %v134, %v760
    %762 = vdwg.mxu0
    %v763 = vxor.u32 %v759, 2147483648
    %v764 = vxor.u32 %v761, 2147483648
    %v765 = vmul.f32 %v763, 1.442695
    %v766 = vpow.pop %v765
    %v767 = vmul.f32 %v764, 1.442695
    %v768 = vpow.pop %v767
    %v769 = vadd.f32 %v766, 1.0
    %v770 = vadd.f32 %v768, 1.0
    %v771 = vrcp.pop %v769
    %v772 = vmul.f32 1.0, %v771
    %v773 = vrcp.pop %v770
    %v774 = vmul.f32 1.0, %v773
    %v775 = vmul.f32 %v772, 2.0
    %v776 = vsub.f32 %v775, 1.0
    %v777 = vmul.f32 %v772, %v654
    %779 = vrot.lane.b32.xlu0 %v776, 64
    %v780 = vpop.permute.xlu0 %779
    %v782 = vmul.f32 %v772, %v780
    %784 = vrot.lane.b32.xlu0 %v782, 32
    %v785 = vpop.permute.xlu0 %784
    %v787 = vadd.f32 %v777, %v785
    %v788 = vtanh.pop %v787
    %790 = vrot.lane.b32.xlu0 %v788, 64
    %v791 = vpop.permute.xlu0 %790
    %v793 = vmul.f32 %v772, %v791
    %v794 = vmul.f32 %v774, 2.0
    %v795 = vsub.f32 %v794, 1.0
    %v796 = vmul.f32 %v774, %v673
    %798 = vrot.lane.b32.xlu0 %v795, 64
    %v799 = vpop.permute.xlu0 %798
    %v801 = vmul.f32 %v774, %v799
    %803 = vrot.lane.b32.xlu0 %v801, 32
    %v804 = vpop.permute.xlu0 %803
    %v806 = vadd.f32 %v796, %v804
    %v807 = vtanh.pop %v806
    %809 = vrot.lane.b32.xlu0 %v807, 64
    %v810 = vpop.permute.xlu0 %809
    %v812 = vmul.f32 %v774, %v810
    %814 = vrot.lane.b32.xlu0 %v793, 32
    %v815 = vpop.permute.xlu0 %814
    %818 = vrot.lane.b32.xlu0 %v812, 64
    %v819 = vpop.permute.xlu0 %818
    %v821 = vsel %vm162, %v815, %v819
    %v824 = vrot.slane %v132, 2
    %v825 = vrot.slane %v134, 2
    %v829 = vsel %vm164, %v821, 0
    %831 = vmatprep.subr.mxu0 %v137
    %832 = vmatpush1.msra.mxu0 %v136
    %833 = vmatprep.subr.mxu0 %v139
    %834 = vmatpush1.msra.mxu0 %v138
    %835 = vmatprep.subr.mxu0 %v141
    %836 = vmatpush1.msra.mxu0 %v140
    %837 = vmatprep.subr.mxu0 %v143
    %838 = vmatpush1.msra.mxu0 %v142
    %839 = vmatprep.subr.mxu0 %v145
    %840 = vmatpush1.msra.mxu0 %v144
    %841 = vmatprep.subr.mxu0 %v147
    %842 = vmatpush1.msra.mxu0 %v146
    %843 = vmatprep.subr.mxu0 %v149
    %844 = vmatpush1.msra.mxu0 %v148
    %845 = vmatprep.subr.mxu0 %v151
    %846 = vmatpush1.msra.mxu0 %v150
    %847 = vmatprep.subr.mxu0 0.0
    %848 = vmatpush1.msra.mxu0 0.0
    %849 = vmatprep.subr.mxu0 0.0
    %850 = vmatpush1.msra.mxu0 0.0
    %851 = vmatprep.subr.mxu0 0.0
    %852 = vmatpush1.msra.mxu0 0.0
    %853 = vmatprep.subr.mxu0 0.0
    %854 = vmatpush1.msra.mxu0 0.0
    %855 = vmatprep.subr.mxu0 0.0
    %856 = vmatpush1.msra.mxu0 0.0
    %857 = vmatprep.subr.mxu0 0.0
    %858 = vmatpush1.msra.mxu0 0.0
    %859 = vmatprep.subr.mxu0 0.0
    %860 = vmatpush1.msra.mxu0 0.0
    %861 = vmatprep.subr.mxu0 0.0
    %862 = vmatpush1.msra.mxu0 0.0
    %863 = vmatprep.subr.mxu0 0.0
    %864 = vmatpush1.msra.mxu0 0.0
    %865 = vmatprep.subr.mxu0 0.0
    %866 = vmatpush1.msra.mxu0 0.0
    %867 = vmatprep.subr.mxu0 0.0
    %868 = vmatpush1.msra.mxu0 0.0
    %869 = vmatprep.subr.mxu0 0.0
    %870 = vmatpush1.msra.mxu0 0.0
    %871 = vmatprep.subr.mxu0 0.0
    %872 = vmatpush1.msra.mxu0 0.0
    %873 = vmatprep.subr.mxu0 0.0
    %874 = vmatpush1.msra.mxu0 0.0
    %875 = vmatprep.subr.mxu0 0.0
    %876 = vmatpush1.msra.mxu0 0.0
    %877 = vmatprep.subr.mxu0 0.0
    %878 = vmatpush1.msra.mxu0 0.0
    %879 = vmatprep.subr.mxu0 0.0
    %880 = vmatpush1.msra.mxu0 0.0
    %881 = vmatprep.subr.mxu0 0.0
    %882 = vmatpush1.msra.mxu0 0.0
    %883 = vmatprep.subr.mxu0 0.0
    %884 = vmatpush1.msra.mxu0 0.0
    %885 = vmatprep.subr.mxu0 0.0
    %886 = vmatpush1.msra.mxu0 0.0
    %887 = vmatprep.subr.mxu0 0.0
    %888 = vmatpush1.msra.mxu0 0.0
    %889 = vmatprep.subr.mxu0 0.0
    %890 = vmatpush1.msra.mxu0 0.0
    %891 = vmatprep.subr.mxu0 0.0
    %892 = vmatpush1.msra.mxu0 0.0
    %893 = vmatprep.subr.mxu0 0.0
    %894 = vmatpush1.msra.mxu0 0.0
    %895 = vmatprep.mubr.f32.mxu0 0.0
    %896 = vmatmul.mubr.f32.gmra.mrb[0].mxu0 %v829
    %v897 = vpop.f32.mrb[0].mxu0
    %v898 = vadd.f32 %v824, %v897
    %v899 = vpop.f32.mrb[0].mxu0
    %v900 = vadd.f32 %v825, %v899
    %901 = vdwg.mxu0
    %v902 = vxor.u32 %v898, 2147483648
    %v903 = vxor.u32 %v900, 2147483648
    %v904 = vmul.f32 %v902, 1.442695
    %v905 = vpow.pop %v904
    %v906 = vmul.f32 %v903, 1.442695
    %v907 = vpow.pop %v906
    %v908 = vadd.f32 %v905, 1.0
    %v909 = vadd.f32 %v907, 1.0
    %v910 = vrcp.pop %v908
    %v911 = vmul.f32 1.0, %v910
    %v912 = vrcp.pop %v909
    %v913 = vmul.f32 1.0, %v912
    %v914 = vmul.f32 %v911, 2.0
    %v915 = vsub.f32 %v914, 1.0
    %v916 = vmul.f32 %v911, %v787
    %918 = vrot.lane.b32.xlu0 %v915, 64
    %v919 = vpop.permute.xlu0 %918
    %v921 = vmul.f32 %v911, %v919
    %923 = vrot.lane.b32.xlu0 %v921, 32
    %v924 = vpop.permute.xlu0 %923
    %v926 = vadd.f32 %v916, %v924
    %v927 = vtanh.pop %v926
    %929 = vrot.lane.b32.xlu0 %v927, 64
    %v930 = vpop.permute.xlu0 %929
    %v932 = vmul.f32 %v911, %v930
    %v933 = vmul.f32 %v913, 2.0
    %v934 = vsub.f32 %v933, 1.0
    %v935 = vmul.f32 %v913, %v806
    %937 = vrot.lane.b32.xlu0 %v934, 64
    %v938 = vpop.permute.xlu0 %937
    %v940 = vmul.f32 %v913, %v938
    %942 = vrot.lane.b32.xlu0 %v940, 32
    %v943 = vpop.permute.xlu0 %942
    %v945 = vadd.f32 %v935, %v943
    %v946 = vtanh.pop %v945
    %948 = vrot.lane.b32.xlu0 %v946, 64
    %v949 = vpop.permute.xlu0 %948
    %v951 = vmul.f32 %v913, %v949
    %953 = vrot.lane.b32.xlu0 %v932, 32
    %v954 = vpop.permute.xlu0 %953
    %957 = vrot.lane.b32.xlu0 %v951, 64
    %v958 = vpop.permute.xlu0 %957
    %v960 = vsel %vm162, %v954, %v958
    %v961 = vrot.slane %v132, 4
    %v962 = vrot.slane %v134, 4
    %v966 = vsel %vm164, %v960, 0
    %968 = vmatprep.subr.mxu0 %v137
    %969 = vmatpush1.msra.mxu0 %v136
    %970 = vmatprep.subr.mxu0 %v139
    %971 = vmatpush1.msra.mxu0 %v138
    %972 = vmatprep.subr.mxu0 %v141
    %973 = vmatpush1.msra.mxu0 %v140
    %974 = vmatprep.subr.mxu0 %v143
    %975 = vmatpush1.msra.mxu0 %v142
    %976 = vmatprep.subr.mxu0 %v145
    %977 = vmatpush1.msra.mxu0 %v144
    %978 = vmatprep.subr.mxu0 %v147
    %979 = vmatpush1.msra.mxu0 %v146
    %980 = vmatprep.subr.mxu0 %v149
    %981 = vmatpush1.msra.mxu0 %v148
    %982 = vmatprep.subr.mxu0 %v151
    %983 = vmatpush1.msra.mxu0 %v150
    %984 = vmatprep.subr.mxu0 0.0
    %985 = vmatpush1.msra.mxu0 0.0
    %986 = vmatprep.subr.mxu0 0.0
    %987 = vmatpush1.msra.mxu0 0.0
    %988 = vmatprep.subr.mxu0 0.0
    %989 = vmatpush1.msra.mxu0 0.0
    %990 = vmatprep.subr.mxu0 0.0
    %991 = vmatpush1.msra.mxu0 0.0
    %992 = vmatprep.subr.mxu0 0.0
    %993 = vmatpush1.msra.mxu0 0.0
    %994 = vmatprep.subr.mxu0 0.0
    %995 = vmatpush1.msra.mxu0 0.0
    %996 = vmatprep.subr.mxu0 0.0
    %997 = vmatpush1.msra.mxu0 0.0
    %998 = vmatprep.subr.mxu0 0.0
    %999 = vmatpush1.msra.mxu0 0.0
    %1000 = vmatprep.subr.mxu0 0.0
    %1001 = vmatpush1.msra.mxu0 0.0
    %1002 = vmatprep.subr.mxu0 0.0
    %1003 = vmatpush1.msra.mxu0 0.0
    %1004 = vmatprep.subr.mxu0 0.0
    %1005 = vmatpush1.msra.mxu0 0.0
    %1006 = vmatprep.subr.mxu0 0.0
    %1007 = vmatpush1.msra.mxu0 0.0
    %1008 = vmatprep.subr.mxu0 0.0
    %1009 = vmatpush1.msra.mxu0 0.0
    %1010 = vmatprep.subr.mxu0 0.0
    %1011 = vmatpush1.msra.mxu0 0.0
    %1012 = vmatprep.subr.mxu0 0.0
    %1013 = vmatpush1.msra.mxu0 0.0
    %1014 = vmatprep.subr.mxu0 0.0
    %1015 = vmatpush1.msra.mxu0 0.0
    %1016 = vmatprep.subr.mxu0 0.0
    %1017 = vmatpush1.msra.mxu0 0.0
    %1018 = vmatprep.subr.mxu0 0.0
    %1019 = vmatpush1.msra.mxu0 0.0
    %1020 = vmatprep.subr.mxu0 0.0
    %1021 = vmatpush1.msra.mxu0 0.0
    %1022 = vmatprep.subr.mxu0 0.0
    %1023 = vmatpush1.msra.mxu0 0.0
    %1024 = vmatprep.subr.mxu0 0.0
    %1025 = vmatpush1.msra.mxu0 0.0
    %1026 = vmatprep.subr.mxu0 0.0
    %1027 = vmatpush1.msra.mxu0 0.0
    %1028 = vmatprep.subr.mxu0 0.0
    %1029 = vmatpush1.msra.mxu0 0.0
    %1030 = vmatprep.subr.mxu0 0.0
    %1031 = vmatpush1.msra.mxu0 0.0
    %1032 = vmatprep.mubr.f32.mxu0 0.0
    %1033 = vmatmul.mubr.f32.gmra.mrb[0].mxu0 %v966
    %v1034 = vpop.f32.mrb[0].mxu0
    %v1035 = vadd.f32 %v961, %v1034
    %v1036 = vpop.f32.mrb[0].mxu0
    %v1037 = vadd.f32 %v962, %v1036
    %1038 = vdwg.mxu0
    %v1039 = vxor.u32 %v1035, 2147483648
    %v1040 = vxor.u32 %v1037, 2147483648
    %v1041 = vmul.f32 %v1039, 1.442695
    %v1042 = vpow.pop %v1041
    %v1043 = vmul.f32 %v1040, 1.442695
    %v1044 = vpow.pop %v1043
    %v1045 = vadd.f32 %v1042, 1.0
    %v1046 = vadd.f32 %v1044, 1.0
    %v1047 = vrcp.pop %v1045
    %v1048 = vmul.f32 1.0, %v1047
    %v1049 = vrcp.pop %v1046
    %v1050 = vmul.f32 1.0, %v1049
    %v1051 = vmul.f32 %v1048, 2.0
    %v1052 = vsub.f32 %v1051, 1.0
    %v1053 = vmul.f32 %v1048, %v926
    %1055 = vrot.lane.b32.xlu0 %v1052, 64
    %v1056 = vpop.permute.xlu0 %1055
    %v1058 = vmul.f32 %v1048, %v1056
    %1060 = vrot.lane.b32.xlu0 %v1058, 32
    %v1061 = vpop.permute.xlu0 %1060
    %v1063 = vadd.f32 %v1053, %v1061
    %v1064 = vtanh.pop %v1063
    %1066 = vrot.lane.b32.xlu0 %v1064, 64
    %v1067 = vpop.permute.xlu0 %1066
    %v1069 = vmul.f32 %v1048, %v1067
    %v1070 = vmul.f32 %v1050, 2.0
    %v1071 = vsub.f32 %v1070, 1.0
    %v1072 = vmul.f32 %v1050, %v945
    %1074 = vrot.lane.b32.xlu0 %v1071, 64
    %v1075 = vpop.permute.xlu0 %1074
    %v1077 = vmul.f32 %v1050, %v1075
    %1079 = vrot.lane.b32.xlu0 %v1077, 32
    %v1080 = vpop.permute.xlu0 %1079
    %v1082 = vadd.f32 %v1072, %v1080
    %v1083 = vtanh.pop %v1082
    %1085 = vrot.lane.b32.xlu0 %v1083, 64
    %v1086 = vpop.permute.xlu0 %1085
    %v1088 = vmul.f32 %v1050, %v1086
    %1090 = vrot.lane.b32.xlu0 %v1069, 32
    %v1091 = vpop.permute.xlu0 %1090
    %1094 = vrot.lane.b32.xlu0 %v1088, 64
    %v1095 = vpop.permute.xlu0 %1094
    %v1097 = vsel %vm162, %v1091, %v1095
    %v1098 = vrot.slane %v132, 6
    %v1099 = vrot.slane %v134, 6
    %v1103 = vsel %vm164, %v1097, 0
    %1105 = vmatprep.subr.mxu0 %v137
    %1106 = vmatpush1.msra.mxu0 %v136
    %1107 = vmatprep.subr.mxu0 %v139
    %1108 = vmatpush1.msra.mxu0 %v138
    %1109 = vmatprep.subr.mxu0 %v141
    %1110 = vmatpush1.msra.mxu0 %v140
    %1111 = vmatprep.subr.mxu0 %v143
    %1112 = vmatpush1.msra.mxu0 %v142
    %1113 = vmatprep.subr.mxu0 %v145
    %1114 = vmatpush1.msra.mxu0 %v144
    %1115 = vmatprep.subr.mxu0 %v147
    %1116 = vmatpush1.msra.mxu0 %v146
    %1117 = vmatprep.subr.mxu0 %v149
    %1118 = vmatpush1.msra.mxu0 %v148
    %1119 = vmatprep.subr.mxu0 %v151
    %1120 = vmatpush1.msra.mxu0 %v150
    %1121 = vmatprep.subr.mxu0 0.0
    %1122 = vmatpush1.msra.mxu0 0.0
    %1123 = vmatprep.subr.mxu0 0.0
    %1124 = vmatpush1.msra.mxu0 0.0
    %1125 = vmatprep.subr.mxu0 0.0
    %1126 = vmatpush1.msra.mxu0 0.0
    %1127 = vmatprep.subr.mxu0 0.0
    %1128 = vmatpush1.msra.mxu0 0.0
    %1129 = vmatprep.subr.mxu0 0.0
    %1130 = vmatpush1.msra.mxu0 0.0
    %1131 = vmatprep.subr.mxu0 0.0
    %1132 = vmatpush1.msra.mxu0 0.0
    %1133 = vmatprep.subr.mxu0 0.0
    %1134 = vmatpush1.msra.mxu0 0.0
    %1135 = vmatprep.subr.mxu0 0.0
    %1136 = vmatpush1.msra.mxu0 0.0
    %1137 = vmatprep.subr.mxu0 0.0
    %1138 = vmatpush1.msra.mxu0 0.0
    %1139 = vmatprep.subr.mxu0 0.0
    %1140 = vmatpush1.msra.mxu0 0.0
    %1141 = vmatprep.subr.mxu0 0.0
    %1142 = vmatpush1.msra.mxu0 0.0
    %1143 = vmatprep.subr.mxu0 0.0
    %1144 = vmatpush1.msra.mxu0 0.0
    %1145 = vmatprep.subr.mxu0 0.0
    %1146 = vmatpush1.msra.mxu0 0.0
    %1147 = vmatprep.subr.mxu0 0.0
    %1148 = vmatpush1.msra.mxu0 0.0
    %1149 = vmatprep.subr.mxu0 0.0
    %1150 = vmatpush1.msra.mxu0 0.0
    %1151 = vmatprep.subr.mxu0 0.0
    %1152 = vmatpush1.msra.mxu0 0.0
    %1153 = vmatprep.subr.mxu0 0.0
    %1154 = vmatpush1.msra.mxu0 0.0
    %1155 = vmatprep.subr.mxu0 0.0
    %1156 = vmatpush1.msra.mxu0 0.0
    %1157 = vmatprep.subr.mxu0 0.0
    %1158 = vmatpush1.msra.mxu0 0.0
    %1159 = vmatprep.subr.mxu0 0.0
    %1160 = vmatpush1.msra.mxu0 0.0
    %1161 = vmatprep.subr.mxu0 0.0
    %1162 = vmatpush1.msra.mxu0 0.0
    %1163 = vmatprep.subr.mxu0 0.0
    %1164 = vmatpush1.msra.mxu0 0.0
    %1165 = vmatprep.subr.mxu0 0.0
    %1166 = vmatpush1.msra.mxu0 0.0
    %1167 = vmatprep.subr.mxu0 0.0
    %1168 = vmatpush1.msra.mxu0 0.0
    %1169 = vmatprep.mubr.f32.mxu0 0.0
    %1170 = vmatmul.mubr.f32.gmra.mrb[0].mxu0 %v1103
    %v1171 = vpop.f32.mrb[0].mxu0
    %v1172 = vadd.f32 %v1098, %v1171
    %v1173 = vpop.f32.mrb[0].mxu0
    %v1174 = vadd.f32 %v1099, %v1173
    %1175 = vdwg.mxu0
    %v1176 = vxor.u32 %v1172, 2147483648
    %v1177 = vxor.u32 %v1174, 2147483648
    %v1178 = vmul.f32 %v1176, 1.442695
    %v1179 = vpow.pop %v1178
    %v1180 = vmul.f32 %v1177, 1.442695
    %v1181 = vpow.pop %v1180
    %v1182 = vadd.f32 %v1179, 1.0
    %v1183 = vadd.f32 %v1181, 1.0
    %v1184 = vrcp.pop %v1182
    %v1185 = vmul.f32 1.0, %v1184
    %v1186 = vrcp.pop %v1183
    %v1187 = vmul.f32 1.0, %v1186
    %v1188 = vmul.f32 %v1185, 2.0
    %v1189 = vsub.f32 %v1188, 1.0
    %v1190 = vmul.f32 %v1185, %v1063
    %1192 = vrot.lane.b32.xlu0 %v1189, 64
    %v1193 = vpop.permute.xlu0 %1192
    %v1195 = vmul.f32 %v1185, %v1193
    %1197 = vrot.lane.b32.xlu0 %v1195, 32
    %v1198 = vpop.permute.xlu0 %1197
    %v1200 = vadd.f32 %v1190, %v1198
    %v1201 = vtanh.pop %v1200
    %1203 = vrot.lane.b32.xlu0 %v1201, 64
    %v1204 = vpop.permute.xlu0 %1203
    %v1206 = vmul.f32 %v1185, %v1204
    %v1207 = vmul.f32 %v1187, 2.0
    %v1208 = vsub.f32 %v1207, 1.0
    %v1209 = vmul.f32 %v1187, %v1082
    %1211 = vrot.lane.b32.xlu0 %v1208, 64
    %v1212 = vpop.permute.xlu0 %1211
    %v1214 = vmul.f32 %v1187, %v1212
    %1216 = vrot.lane.b32.xlu0 %v1214, 32
    %v1217 = vpop.permute.xlu0 %1216
    %v1219 = vadd.f32 %v1209, %v1217
    %v1220 = vtanh.pop %v1219
    %1222 = vrot.lane.b32.xlu0 %v1220, 64
    %v1223 = vpop.permute.xlu0 %1222
    %v1225 = vmul.f32 %v1187, %v1223
    %1227 = vrot.lane.b32.xlu0 %v1206, 32
    %v1228 = vpop.permute.xlu0 %1227
    %1231 = vrot.lane.b32.xlu0 %v1225, 64
    %v1232 = vpop.permute.xlu0 %1231
    %v1234 = vsel %vm162, %v1228, %v1232
    %v1236 = vsel %vm164, %v1234, 0
    %1238 = vmatprep.subr.mxu0 %v137
    %1239 = vmatpush1.msra.mxu0 %v136
    %1240 = vmatprep.subr.mxu0 %v139
    %1241 = vmatpush1.msra.mxu0 %v138
    %1242 = vmatprep.subr.mxu0 %v141
    %1243 = vmatpush1.msra.mxu0 %v140
    %1244 = vmatprep.subr.mxu0 %v143
    %1245 = vmatpush1.msra.mxu0 %v142
    %1246 = vmatprep.subr.mxu0 %v145
    %1247 = vmatpush1.msra.mxu0 %v144
    %1248 = vmatprep.subr.mxu0 %v147
    %1249 = vmatpush1.msra.mxu0 %v146
    %1250 = vmatprep.subr.mxu0 %v149
    %1251 = vmatpush1.msra.mxu0 %v148
    %1252 = vmatprep.subr.mxu0 %v151
    %1253 = vmatpush1.msra.mxu0 %v150
    %1254 = vmatprep.subr.mxu0 0.0
    %1255 = vmatpush1.msra.mxu0 0.0
    %1256 = vmatprep.subr.mxu0 0.0
    %1257 = vmatpush1.msra.mxu0 0.0
    %1258 = vmatprep.subr.mxu0 0.0
    %1259 = vmatpush1.msra.mxu0 0.0
    %1260 = vmatprep.subr.mxu0 0.0
    %1261 = vmatpush1.msra.mxu0 0.0
    %1262 = vmatprep.subr.mxu0 0.0
    %1263 = vmatpush1.msra.mxu0 0.0
    %1264 = vmatprep.subr.mxu0 0.0
    %1265 = vmatpush1.msra.mxu0 0.0
    %1266 = vmatprep.subr.mxu0 0.0
    %1267 = vmatpush1.msra.mxu0 0.0
    %1268 = vmatprep.subr.mxu0 0.0
    %1269 = vmatpush1.msra.mxu0 0.0
    %1270 = vmatprep.subr.mxu0 0.0
    %1271 = vmatpush1.msra.mxu0 0.0
    %1272 = vmatprep.subr.mxu0 0.0
    %1273 = vmatpush1.msra.mxu0 0.0
    %1274 = vmatprep.subr.mxu0 0.0
    %1275 = vmatpush1.msra.mxu0 0.0
    %1276 = vmatprep.subr.mxu0 0.0
    %1277 = vmatpush1.msra.mxu0 0.0
    %1278 = vmatprep.subr.mxu0 0.0
    %1279 = vmatpush1.msra.mxu0 0.0
    %1280 = vmatprep.subr.mxu0 0.0
    %1281 = vmatpush1.msra.mxu0 0.0
    %1282 = vmatprep.subr.mxu0 0.0
    %1283 = vmatpush1.msra.mxu0 0.0
    %1284 = vmatprep.subr.mxu0 0.0
    %1285 = vmatpush1.msra.mxu0 0.0
    %1286 = vmatprep.subr.mxu0 0.0
    %1287 = vmatpush1.msra.mxu0 0.0
    %1288 = vmatprep.subr.mxu0 0.0
    %1289 = vmatpush1.msra.mxu0 0.0
    %1290 = vmatprep.subr.mxu0 0.0
    %1291 = vmatpush1.msra.mxu0 0.0
    %1292 = vmatprep.subr.mxu0 0.0
    %1293 = vmatpush1.msra.mxu0 0.0
    %1294 = vmatprep.subr.mxu0 0.0
    %1295 = vmatpush1.msra.mxu0 0.0
    %1296 = vmatprep.subr.mxu0 0.0
    %1297 = vmatpush1.msra.mxu0 0.0
    %1298 = vmatprep.subr.mxu0 0.0
    %1299 = vmatpush1.msra.mxu0 0.0
    %1300 = vmatprep.subr.mxu0 0.0
    %1301 = vmatpush1.msra.mxu0 0.0
    %1302 = vmatprep.mubr.f32.mxu0 0.0
    %1303 = vmatmul.mubr.f32.gmra.mrb[0].mxu0 %v1236
    %v1304 = vpop.f32.mrb[0].mxu0
    %v1305 = vpop.f32.mrb[0].mxu0
    %v1306 = vadd.f32 %v49, %v1305
    %1307 = vdwg.mxu0
    %v1308 = vxor.u32 %v1306, 2147483648
    %v1309 = vmul.f32 %v1308, 1.442695
    %v1310 = vpow.pop %v1309
    %v1311 = vadd.f32 %v1310, 1.0
    %v1312 = vrcp.pop %v1311
    %v1313 = vmul.f32 1.0, %v1312
    %v1314 = vmul.f32 %v1313, 2.0
    %v1315 = vsub.f32 %v1314, 1.0
    %v1316 = vmul.f32 %v1313, %v1219
    %1318 = vrot.lane.b32.xlu0 %v1315, 64
    %v1319 = vpop.permute.xlu0 %1318
    %v1321 = vmul.f32 %v1313, %v1319
    %1323 = vrot.lane.b32.xlu0 %v1321, 32
    %v1324 = vpop.permute.xlu0 %1323
    %v1326 = vadd.f32 %v1316, %v1324
    %v1327 = vtanh.pop %v1326
    %1329 = vrot.lane.b32.xlu0 %v1327, 64
    %v1330 = vpop.permute.xlu0 %1329
    %v1332 = vmul.f32 %v1313, %v1330
    %v1333 = vrot.slane %v542, 6
    %v1335 = vrot.slane %v679, 4
    %v1337 = vrot.slane %v812, 2
    %v1339 = vrot.slane %v1088, 6
    %v1341 = vrot.slane %v1225, 4
    %v1344 = vrot.slane %v1332, 2
    %vm1346 = vcmask 1041408
    %v1347 = vsel %vm1346, %v405, %v1333
    %vm1348 = vcmask 1043456
    %v1349 = vsel %vm1348, %v1347, %v1335
    %vm1350 = vcmask 1045504
    %v1351 = vsel %vm1350, %v1349, %v1337
    %v1352 = vsel %vm1346, %v951, %v1339
    %v1353 = vsel %vm1348, %v1352, %v1341
    %v1354 = vsel %vm1350, %v1353, %v1344
    %v1355 = vld [vmem:[%s6] sm:$0xff]
    %v1356 = vld [vmem:[%s6 + $0x8] sm:$0xff]
    %v1357 = vld [vmem:[%s6 + $0x10] sm:$0xff]
    %v1358 = vld [vmem:[%s6 + $0x18] sm:$0xff]
    %v1359 = vld [vmem:[%s7] sm:$0x1]
    %v1361 = vlaneseq
    %v1362 = vshrl.u32 %v1361, 7
    %v1363 = vsub.s32 0, %v1362
    %v1364 = vrot.slane %v1359, %v1363
    %1368 = vrot.lane.b32.xlu0 %v1351, 32
    %v1369 = vpop.permute.xlu0 %1368
    %1370 = vrot.lane.b32.xlu0 %v1354, 32
    %v1371 = vpop.permute.xlu0 %1370
    %v1372 = vsel %vm162, %v1369, 0
    %v1374 = vsel %vm162, %v1371, 0
    %1376 = vmatprep.subr.mxu0 0.0
    %1377 = vmatpush1.msra.mxu0 %v1355
    %1378 = vmatprep.subr.mxu0 0.0
    %1379 = vmatpush1.msra.mxu0 %v1356
    %1380 = vmatprep.subr.mxu0 0.0
    %1381 = vmatpush1.msra.mxu0 %v1357
    %1382 = vmatprep.subr.mxu0 0.0
    %1383 = vmatpush1.msra.mxu0 %v1358
    %1384 = vmatprep.subr.mxu0 0.0
    %1385 = vmatpush1.msra.mxu0 0.0
    %1386 = vmatprep.subr.mxu0 0.0
    %1387 = vmatpush1.msra.mxu0 0.0
    %1388 = vmatprep.subr.mxu0 0.0
    %1389 = vmatpush1.msra.mxu0 0.0
    %1390 = vmatprep.subr.mxu0 0.0
    %1391 = vmatpush1.msra.mxu0 0.0
    %1392 = vmatprep.subr.mxu0 0.0
    %1393 = vmatpush1.msra.mxu0 0.0
    %1394 = vmatprep.subr.mxu0 0.0
    %1395 = vmatpush1.msra.mxu0 0.0
    %1396 = vmatprep.subr.mxu0 0.0
    %1397 = vmatpush1.msra.mxu0 0.0
    %1398 = vmatprep.subr.mxu0 0.0
    %1399 = vmatpush1.msra.mxu0 0.0
    %1400 = vmatprep.subr.mxu0 0.0
    %1401 = vmatpush1.msra.mxu0 0.0
    %1402 = vmatprep.subr.mxu0 0.0
    %1403 = vmatpush1.msra.mxu0 0.0
    %1404 = vmatprep.subr.mxu0 0.0
    %1405 = vmatpush1.msra.mxu0 0.0
    %1406 = vmatprep.subr.mxu0 0.0
    %1407 = vmatpush1.msra.mxu0 0.0
    %1408 = vmatprep.subr.mxu0 0.0
    %1409 = vmatpush1.msra.mxu0 0.0
    %1410 = vmatprep.subr.mxu0 0.0
    %1411 = vmatpush1.msra.mxu0 0.0
    %1412 = vmatprep.subr.mxu0 0.0
    %1413 = vmatpush1.msra.mxu0 0.0
    %1414 = vmatprep.subr.mxu0 0.0
    %1415 = vmatpush1.msra.mxu0 0.0
    %1416 = vmatprep.subr.mxu0 0.0
    %1417 = vmatpush1.msra.mxu0 0.0
    %1418 = vmatprep.subr.mxu0 0.0
    %1419 = vmatpush1.msra.mxu0 0.0
    %1420 = vmatprep.subr.mxu0 0.0
    %1421 = vmatpush1.msra.mxu0 0.0
    %1422 = vmatprep.subr.mxu0 0.0
    %1423 = vmatpush1.msra.mxu0 0.0
    %1424 = vmatprep.subr.mxu0 0.0
    %1425 = vmatpush1.msra.mxu0 0.0
    %1426 = vmatprep.subr.mxu0 0.0
    %1427 = vmatpush1.msra.mxu0 0.0
    %1428 = vmatprep.subr.mxu0 0.0
    %1429 = vmatpush1.msra.mxu0 0.0
    %1430 = vmatprep.subr.mxu0 0.0
    %1431 = vmatpush1.msra.mxu0 0.0
    %1432 = vmatprep.subr.mxu0 0.0
    %1433 = vmatpush1.msra.mxu0 0.0
    %1434 = vmatprep.subr.mxu0 0.0
    %1435 = vmatpush1.msra.mxu0 0.0
    %1436 = vmatprep.subr.mxu0 0.0
    %1437 = vmatpush1.msra.mxu0 0.0
    %1438 = vmatprep.subr.mxu0 0.0
    %1439 = vmatpush1.msra.mxu0 0.0
    %1440 = vmatprep.mubr.f32.mxu0 0.0
    %1441 = vmatmul.mubr.f32.gmra.mrb[0].mxu0 %v1372
    %v1442 = vpop.f32.mrb[0].mxu0
    %v1443 = vadd.f32 %v1364, %v1442
    %v1444 = vpop.f32.mrb[0].mxu0
    %1445 = vmatprep.mubr.f32.mxu0 0.0
    %1446 = vmatmul.mubr.f32.gmra.mrb[0].mxu0 %v1374
    %v1447 = vpop.f32.mrb[0].mxu0
    %v1448 = vadd.f32 %v1364, %v1447
    %v1449 = vpop.f32.mrb[0].mxu0
    %1450 = vdwg.mxu0
    %1451 = vst [vmem:[%s8] sm:$0xff] %v1443
    %1452 = vst [vmem:[%s8 + $0x8] sm:$0xff] %v1448
    %vm1453 = vcmask 254976
    %1454 = vst.msk [vmem:[#allocation2] sm:$0x3] %vm1453, %v1228
    %1456 = vrot.lane.b32.xlu0 %v1200, 96
    %v1457 = vpop.permute.xlu0 %1456
    %1459 = vst.msk [vmem:[#allocation4] sm:$0x3] %vm1453, %v1457
    %1460 = vrot.lane.b32.xlu0 %v1332, 32
    %v1461 = vpop.permute.xlu0 %1460
    %s1463 = scalar_lea.vmem [#allocation2], 2
    %1464 = vst.msk [vmem:[%s1463] sm:$0x3] %vm1453, %v1461
    %1466 = vrot.lane.b32.xlu0 %v1326, 96
    %v1467 = vpop.permute.xlu0 %1466
    %s1469 = scalar_lea.vmem [#allocation4], 2
    %1470 = vst.msk [vmem:[%s1469] sm:$0x3] %vm1453, %v1467
    // Predicated region
    $region34: #{decoder_forward.1} parent=1 // pred_check
      _
    $region35: #{decoder_forward.1} parent=1 // pred_check_branch
      %1472 = sbr.rel (0) target = $region37
    $region36: #{decoder_forward.1} parent=1 // pred_region
      _
    $region37: #{decoder_forward.1} parent=1 // pred_fallthru
      _
    // Predicated region
    $region38: #{decoder_forward.1} parent=1 // pred_check
      _
    $region39: #{decoder_forward.1} parent=1 // pred_check_branch
      %1474 = sbr.rel (0) target = $region41
    $region40: #{decoder_forward.1} parent=1 // pred_region
      %s1476 = ssub.s32 64, 64
      %1477 = vsyncadd [#allocation3], %s1476
      %s1478 = sshll.u32 [#allocation2], 4
      %s1479 = int_to_ptr.vmem [resolvable:$true] %s1478
      %1484 = dma.vmem_to_hbm [thread:$0]  %s1479, 64, %s9, [#allocation3], 32, 32, 2
    $region41: #{decoder_forward.1} parent=1 // pred_fallthru
      _
    // Predicated region
    $region42: #{decoder_forward.1} parent=1 // pred_check
      _
    $region43: #{decoder_forward.1} parent=1 // pred_check_branch
      %1486 = sbr.rel (0) target = $region45
    $region44: #{decoder_forward.1} parent=1 // pred_region
      %s1488 = ssub.s32 64, 64
      %1489 = vsyncadd [#allocation5], %s1488
      %s1490 = sshll.u32 [#allocation4], 4
      %s1491 = int_to_ptr.vmem [resolvable:$true] %s1490
      %1496 = dma.vmem_to_hbm [thread:$0]  %s1491, 64, %s10, [#allocation5], 32, 32, 2
    $region45: #{decoder_forward.1} parent=1 // pred_fallthru
      _
    // Predicated region
    $region46: #{decoder_forward.1} parent=1 // pred_check
      _
    $region47: #{decoder_forward.1} parent=1 // pred_check_branch
      %1498 = sbr.rel (0) target = $region49
    $region48: #{decoder_forward.1} parent=1 // pred_region
      _
    $region49: #{decoder_forward.1} parent=1 // pred_fallthru
      _
    // Predicated region
    $region50: #{decoder_forward.1} parent=1 // pred_check
      _
    $region51: #{decoder_forward.1} parent=1 // pred_check_branch
      %1500 = sbr.rel (0) target = $region53
    $region52: #{decoder_forward.1} parent=1 // pred_region
      %1501 = dma.done [#allocation3], 64
    $region53: #{decoder_forward.1} parent=1 // pred_fallthru
      _
    // Predicated region
    $region54: #{decoder_forward.1} parent=1 // pred_check
      _
    $region55: #{decoder_forward.1} parent=1 // pred_check_branch
      %1503 = sbr.rel (0) target = $region57
    $region56: #{decoder_forward.1} parent=1 // pred_region
      %1504 = dma.done [#allocation5], 64
    $region57: #{decoder_forward.1} parent=1 // pred_fallthru
      _
    %1505 = vsyncpa [#allocation3], 1
    %1506 = vsyncpa [#allocation5], 1

</llo_original>
